<compile_context>
chip_gen: v7x
topology: tpu7x:2x2x1
jax: 0.10.0
libtpu: 0.0.40
codegen_flags: <defaults>
</compile_context>

<pallas_src>
import math
import numpy as np
import jax
import jax.numpy as jnp
from jax.experimental import pallas as pl
from jax.experimental.pallas import tpu as pltpu

NUM_HEADS = 8       # nn.TransformerEncoderLayer(nhead=8)
LN_EPS = 1e-5       # PyTorch LayerNorm default eps


# ----------------------------- math helpers (kernel + ref) -----------------------------

def _gelu(x, approx_recip=False):
    # torch activation='gelu' = exact erf-based GELU; erf via Abramowitz & Stegun
    # 7.1.26 polynomial (abs err < 1.5e-7).  In-kernel, the divide goes to the EUP.
    a1, a2, a3, a4, a5 = (0.254829592, -0.284496736, 1.421413741,
                          -1.453152027, 1.061405429)
    p = 0.3275911
    u = x * (1.0 / math.sqrt(2.0))
    au = jnp.abs(u)
    denom = 1.0 + p * au
    t = pl.reciprocal(denom, approx=True) if approx_recip else 1.0 / denom
    poly = ((((a5 * t + a4) * t + a3) * t + a2) * t + a1) * t
    erf_abs = 1.0 - poly * jnp.exp(-au * au)
    erf = jnp.where(u < 0.0, -erf_abs, erf_abs)
    return 0.5 * x * (1.0 + erf)


def _layer_norm(x, gamma, beta):
    mean = jnp.mean(x, axis=-1, keepdims=True)
    var = jnp.mean((x - mean) ** 2, axis=-1, keepdims=True)   # biased var (torch)
    return (x - mean) * jax.lax.rsqrt(var + LN_EPS) * gamma + beta


# ----------------------------------- kernel --------------------------------------------

def make_encoder_stack_kernel(H):
    """Fused kernel: all encoder layers + final LayerNorm.

    grid = (batch, layer); activations for one batch row-block live in the output
    VMEM block across the layer sweep; per-layer weights are streamed.
    """
    def kernel(x_ref, wqkv_ref, wo_ref, w1_ref, w2_ref, vec_ref,
               gf_ref, bf_ref, o_ref, ctx_ref):
        l = pl.program_id(1)
        last = pl.num_programs(1) - 1
        S, E = o_ref.shape
        F = w1_ref.shape[2]
        hd = E // H

        @pl.when(l == 0)
        def _():                       # load this row-block's input activations once
            o_ref[...] = x_ref[...]

        x = o_ref[...]                 # (S, E) f32, VMEM-resident across layers
        xb = x.astype(jnp.bfloat16)

        # one DMA's worth of packed per-layer vectors:
        #   row0: [bq*s | bk | bv]  row1: bo  row2: b1  row3: b2
        #   row4: g1  row5: be1  row6: g2  row7: be2
        vec = vec_ref[0]
        bqkv = vec[0:1, :3 * E]
        bo = vec[1:2, :E]
        b1 = vec[2:3, :F]
        b2 = vec[3:4, :E]
        g1, be1 = vec[4:5, :E], vec[5:6, :E]
        g2, be2 = vec[6:7, :E], vec[7:8, :E]

        # fused QKV projection (1/sqrt(head_dim) already folded into the Q block)
        qkv = jnp.dot(xb, wqkv_ref[0], preferred_element_type=jnp.float32) + bqkv
        q = qkv[:, :E].astype(jnp.bfloat16)
        k = qkv[:, E:2 * E].astype(jnp.bfloat16)
        v = qkv[:, 2 * E:].astype(jnp.bfloat16)

        # per-head attention; heads land in a lane-dense bf16 ctx scratch
        for h in range(H):             # static unroll, small H
            c = h * hd
            s = jax.lax.dot_general(q[:, c:c + hd], k[:, c:c + hd],
                                    (((1,), (1,)), ((), ())),
                                    preferred_element_type=jnp.float32)   # (S, S)
            s = s - jnp.max(s, axis=-1, keepdims=True)
            p = jnp.exp(s)
            p = p * pl.reciprocal(jnp.sum(p, axis=-1, keepdims=True), approx=True)
            ctx = jnp.dot(p.astype(jnp.bfloat16), v[:, c:c + hd],
                          preferred_element_type=jnp.float32)             # (S, hd)
            ctx_ref[:, c:c + hd] = ctx.astype(jnp.bfloat16)

        # head concat folded into one lane-dense (S,E)@(E,E) bf16 matmul
        attn = jnp.dot(ctx_ref[...], wo_ref[0],
                       preferred_element_type=jnp.float32) + bo
        x1 = _layer_norm(x + attn, g1, be1)                  # norm1 (post-norm)

        # FFN: linear1 -> GELU -> linear2 (bf16 matmuls, f32 accumulation)
        hid = _gelu(jnp.dot(x1.astype(jnp.bfloat16), w1_ref[0],
                            preferred_element_type=jnp.float32) + b1,
                    approx_recip=True)
        ff = jnp.dot(hid.astype(jnp.bfloat16), w2_ref[0],
                     preferred_element_type=jnp.float32) + b2
        y = _layer_norm(x1 + ff, g2, be2)                    # norm2

        @pl.when(l != last)
        def _():                        # carry to next layer (stays in VMEM)
            o_ref[...] = y

        @pl.when(l == last)
        def _():                        # fused final encoder LayerNorm
            o_ref[...] = _layer_norm(y, gf_ref[...], bf_ref[...])

    return kernel


# ------------------------------ pallas_call wrapper --------------------------------

def encoder_stack(x2d, layers, norm_g, norm_b, *, batch, seq):
    N, E = x2d.shape
    L = layers["wqkv"].shape[0]
    F = layers["w1"].shape[2]
    Vmax = layers["vecs"].shape[2]

    def per_layer(shape):               # streamed per-layer block (prefetched)
        nd = len(shape)
        return pl.BlockSpec(shape, lambda b, l, nd=nd: (l,) + (0,) * (nd - 1))

    def const(shape):                   # constant block, fetched once
        nd = len(shape)
        return pl.BlockSpec(shape, lambda b, l, nd=nd: (0,) * nd)

    per_layer_w_bytes = (layers["wqkv"].nbytes + layers["wo"].nbytes
                         + layers["w1"].nbytes + layers["w2"].nbytes
                         + layers["vecs"].nbytes) // L
    vmem_limit = int(max(32 << 20,
                         2 * per_layer_w_bytes + 4 * x2d.nbytes + (8 << 20)))

    grid_spec = pltpu.PrefetchScalarGridSpec(
        num_scalar_prefetch=0,
        grid=(batch, L),
        in_specs=[
            pl.BlockSpec((seq, E), lambda b, l: (b, 0)),    # input rows of batch b
            per_layer((1, E, 3 * E)),                       # fused QKV (Q pre-scaled)
            per_layer((1, E, E)),                           # attention out-projection
            per_layer((1, E, F)),                           # linear1
            per_layer((1, F, E)),                           # linear2
            per_layer((1, 8, Vmax)),                        # packed biases / LN params
            const((1, E)), const((1, E)),                   # final encoder LayerNorm
        ],
        out_specs=pl.BlockSpec((seq, E), lambda b, l: (b, 0)),
        scratch_shapes=[pltpu.VMEM((seq, E), jnp.bfloat16)],  # lane-dense ctx (heads)
    )
    return pl.pallas_call(
        make_encoder_stack_kernel(NUM_HEADS),
        out_shape=jax.ShapeDtypeStruct((N, E), jnp.float32),
        grid_spec=grid_spec,
        compiler_params=pltpu.CompilerParams(
            dimension_semantics=("parallel", "arbitrary"),
            vmem_limit_bytes=vmem_limit),
    )(x2d, layers["wqkv"], layers["wo"], layers["w1"], layers["w2"],
      layers["vecs"], norm_g, norm_b)


# --------------------------- parameters / positional enc ---------------------------

def make_positional_encoding(max_len, emb_size):
    position = jnp.arange(max_len, dtype=jnp.float32)[:, None]
    div_term = jnp.exp(jnp.arange(0, emb_size, 2, dtype=jnp.float32)
                       * (-math.log(10000.0) / emb_size))
    pe = jnp.zeros((max_len, emb_size), jnp.float32)
    pe = pe.at[:, 0::2].set(jnp.sin(position * div_term))
    pe = pe.at[:, 1::2].set(jnp.cos(position * div_term))
    return pe[:, None, :]                 # (max_len, 1, E)


def init_params(key, vocab_size, emb_size, hidden_size, num_layer, max_len):
    E, F, L = emb_size, hidden_size, num_layer
    hd = E // NUM_HEADS
    inv_sqrt_hd = 1.0 / math.sqrt(hd)
    Vmax = max(3 * E, F)
    keys = iter(jax.random.split(key, 2 + 16 * L))

    def nrm(shape, scale=0.05):
        return (scale * jax.random.normal(next(keys), shape)).astype(jnp.float32)

    wqkv_l, wo_l, w1_l, w2_l, vecs_l = [], [], [], [], []
    for _ in range(L):
        wq, wk, wv = nrm((E, E)), nrm((E, E)), nrm((E, E))
        bq, bk, bv = nrm((E,)), nrm((E,)), nrm((E,))
        wo, bo = nrm((E, E)), nrm((E,))
        w1, b1 = nrm((E, F)), nrm((F,))
        w2, b2 = nrm((F, E)), nrm((E,))
        g1, be1 = jnp.ones((E,), jnp.float32), jnp.zeros((E,), jnp.float32)
        g2, be2 = jnp.ones((E,), jnp.float32), jnp.zeros((E,), jnp.float32)

        # fuse QKV; fold the 1/sqrt(head_dim) attention scale into the Q block
        wqkv_l.append(jnp.concatenate([wq * inv_sqrt_hd, wk, wv], axis=1))
        wo_l.append(wo); w1_l.append(w1); w2_l.append(w2)

        # pack the 10 small per-layer vectors into one (8, Vmax) slab
        vec = np.zeros((8, Vmax), np.float32)
        vec[0, :3 * E] = np.asarray(jnp.concatenate([bq * inv_sqrt_hd, bk, bv]))
        vec[1, :E] = np.asarray(bo)
        vec[2, :F] = np.asarray(b1)
        vec[3, :E] = np.asarray(b2)
        vec[4, :E] = np.asarray(g1)
        vec[5, :E] = np.asarray(be1)
        vec[6, :E] = np.asarray(g2)
        vec[7, :E] = np.asarray(be2)
        vecs_l.append(jnp.asarray(vec))

    params = {
        "embedding": nrm((vocab_size, E), 1.0),
        "pe": make_positional_encoding(max_len + 1, E),
        "norm_g": jnp.ones((1, E), jnp.float32),
        "norm_b": jnp.zeros((1, E), jnp.float32),
        "layers": {
            # weights stored in x @ W convention, stacked over layers; big matrices
            # in bf16 (f32 accumulation in-kernel)
            "wqkv": jnp.stack(wqkv_l).astype(jnp.bfloat16),   # (L, E, 3E)
            "wo":   jnp.stack(wo_l).astype(jnp.bfloat16),     # (L, E, E)
            "w1":   jnp.stack(w1_l).astype(jnp.bfloat16),     # (L, E, F)
            "w2":   jnp.stack(w2_l).astype(jnp.bfloat16),     # (L, F, E)
            "vecs": jnp.stack(vecs_l),                        # (L, 8, Vmax) f32
        },
    }
    return params


# -------------------------------- forward (wrapper) --------------------------------

def transformer_encoder_forward(src, params, emb_size):
    """src: (S, B) int32 token ids  ->  (S, B, E) float32 (PyTorch convention)."""
    S, B = src.shape
    E = emb_size
    # Gather with transposed indices -> (B, S, E) directly (no activation transpose).
    x = params["embedding"][src.T] * math.sqrt(E)
    x = x + params["pe"][:S, 0, :]                 # positional encoding (broadcast B)
    x2d = x.reshape(B * S, E)                      # lane-dense activation slab
    y2d = encoder_stack(x2d, params["layers"], params["norm_g"], params["norm_b"],
                        batch=B, seq=S)
    y = y2d.reshape(B, S, E)
    return jnp.transpose(y, (1, 0, 2))             # -> (S, B, E) PyTorch convention


# ------------------------------ pure-JAX reference ---------------------------------

def reference_forward(src, params, emb_size):
    S, B = src.shape
    E = emb_size
    H = NUM_HEADS
    hd = E // H
    st = params["layers"]
    L = st["wqkv"].shape[0]
    F = st["w1"].shape[2]
    x = params["embedding"][src.T] * math.sqrt(E) + params["pe"][:S, 0, :]  # (B,S,E)
    for l in range(L):
        wqkv = st["wqkv"][l].astype(jnp.float32)        # Q block pre-scaled
        vec = st["vecs"][l]
        bqkv = vec[0, :3 * E]
        bo, b1, b2 = vec[1, :E], vec[2, :F], vec[3, :E]
        g1, be1, g2, be2 = vec[4, :E], vec[5, :E], vec[6, :E], vec[7, :E]
        qkv = jnp.einsum("bse,ef->bsf", x, wqkv) + bqkv
        q = qkv[..., :E].reshape(B, S, H, hd)
        k = qkv[..., E:2 * E].reshape(B, S, H, hd)
        v = qkv[..., 2 * E:].reshape(B, S, H, hd)
        s = jnp.einsum("bshd,bthd->bhst", q, k)         # scale folded into wq/bq
        p = jax.nn.softmax(s, axis=-1)
        ctx = jnp.einsum("bhst,bthd->bshd", p, v).reshape(B, S, E)
        attn = jnp.einsum("bse,ef->bsf", ctx, st["wo"][l].astype(jnp.float32)) + bo
        x1 = _layer_norm(x + attn, g1, be1)
        hid = _gelu(jnp.einsum("bse,ef->bsf", x1, st["w1"][l].astype(jnp.float32)) + b1)
        ff = jnp.einsum("bsf,fe->bse", hid, st["w2"][l].astype(jnp.float32)) + b2
        x = _layer_norm(x1 + ff, g2, be2)
    x = _layer_norm(x, params["norm_g"], params["norm_b"])
    return jnp.transpose(x, (1, 0, 2))


# ------------------------------------ main ------------------------------------------

if __name__ == "__main__":
    # Small shapes consistent with the module: nhead=8 -> emb divisible by 8,
    # max_len=7 -> positional table of length 8, so seq_len <= 8.
    VOCAB, EMB, HIDDEN, NLAYERS, MAX_LEN = 16, 32, 32, 2, 7
    SEQ, BATCH = 8, 2

    root = jax.random.PRNGKey(0)
    k_param, k_src = jax.random.split(root)
    params = init_params(k_param, VOCAB, EMB, HIDDEN, NLAYERS, MAX_LEN)
    src = jax.random.randint(k_src, (SEQ, BATCH), 0, VOCAB, dtype=jnp.int32)

    out = jax.block_until_ready(transformer_encoder_forward(src, params, EMB))
    assert out.shape == (SEQ, BATCH, EMB) and out.dtype == jnp.float32

    ref = jax.block_until_ready(reference_forward(src, params, EMB))
    # Tolerance covers bf16 matmul inputs (f32 accumulation) + approx reciprocals
    # vs the f32 reference.
    if not np.allclose(np.asarray(out), np.asarray(ref), atol=5e-2, rtol=5e-2):
        max_err = float(np.max(np.abs(np.asarray(out) - np.asarray(ref))))
        raise AssertionError(f"Pallas output does not match reference (max err {max_err})")

    print("KERNEL_OK")
</pallas_src>

<mosaic_0001>
module attributes {stable_mosaic.version = 11 : i64} {
  func.func @kernel(%arg0: i32, %arg1: i32, %arg2: memref<8x32xf32, #tpu.memory_space<vmem>>, %arg3: memref<1x32x96xbf16, #tpu.memory_space<vmem>>, %arg4: memref<1x32x32xbf16, #tpu.memory_space<vmem>>, %arg5: memref<1x32x32xbf16, #tpu.memory_space<vmem>>, %arg6: memref<1x32x32xbf16, #tpu.memory_space<vmem>>, %arg7: memref<1x8x96xf32, #tpu.memory_space<vmem>>, %arg8: memref<1x32xf32, #tpu.memory_space<vmem>>, %arg9: memref<1x32xf32, #tpu.memory_space<vmem>>, %arg10: memref<8x32xf32, #tpu.memory_space<vmem>>, %arg11: memref<8x32xbf16, #tpu.memory_space<vmem>>) attributes {dimension_semantics = [#tpu.dimension_semantics<parallel>, #tpu.dimension_semantics<arbitrary>], iteration_bounds = array<i64: 2, 2>, scalar_prefetch = 0 : i64, scratch_operands = 1 : i64, tpu.core_type = #tpu.core_type<tc>, window_params = [{transform_indices = @transform_0, window_bounds = array<i64: 8, 32>}, {transform_indices = @transform_1, window_bounds = array<i64: 1, 32, 96>}, {transform_indices = @transform_2, window_bounds = array<i64: 1, 32, 32>}, {transform_indices = @transform_3, window_bounds = array<i64: 1, 32, 32>}, {transform_indices = @transform_4, window_bounds = array<i64: 1, 32, 32>}, {transform_indices = @transform_5, window_bounds = array<i64: 1, 8, 96>}, {pipeline_mode = #tpu.pipeline_mode<synchronous>, transform_indices = @transform_6, window_bounds = array<i64: 1, 32>}, {pipeline_mode = #tpu.pipeline_mode<synchronous>, transform_indices = @transform_7, window_bounds = array<i64: 1, 32>}, {transform_indices = @transform_8, window_bounds = array<i64: 8, 32>}]} {
    %c0_i32 = arith.constant 0 : i32
    %0 = arith.cmpi eq, %arg1, %c0_i32 : i32
    %1 = arith.extui %0 : i1 to i32
    %c0_i32_0 = arith.constant 0 : i32
    %2 = arith.cmpi ne, %1, %c0_i32_0 : i32
    scf.if %2 {
      %c0_90 = arith.constant 0 : index
      %c0_91 = arith.constant 0 : index
      %279 = vector.load %arg2[%c0_90, %c0_91] : memref<8x32xf32, #tpu.memory_space<vmem>>, vector<8x32xf32>
      %c0_92 = arith.constant 0 : index
      %c0_93 = arith.constant 0 : index
      %280 = vector.load %arg10[%c0_92, %c0_93] : memref<8x32xf32, #tpu.memory_space<vmem>>, vector<8x32xf32>
      tpu.vector_store %arg10[%c0_92, %c0_93], %279 {strides = array<i32>} : memref<8x32xf32, #tpu.memory_space<vmem>>, vector<8x32xf32>,
    } else {
    }
    %c0 = arith.constant 0 : index
    %c0_1 = arith.constant 0 : index
    %3 = vector.load %arg10[%c0, %c0_1] : memref<8x32xf32, #tpu.memory_space<vmem>>, vector<8x32xf32>
    %4 = arith.truncf %3 : vector<8x32xf32> to vector<8x32xbf16>
    %c0_2 = arith.constant 0 : index
    %c0_3 = arith.constant 0 : index
    %c0_4 = arith.constant 0 : index
    %5 = vector.load %arg7[%c0_2, %c0_3, %c0_4] : memref<1x8x96xf32, #tpu.memory_space<vmem>>, vector<1x8x96xf32>
    %6 = vector.shape_cast %5 : vector<1x8x96xf32> to vector<8x96xf32>
    %7 = vector.extract_strided_slice %6 {offsets = [0, 0], sizes = [1, 96], strides = [1, 1]} : vector<8x96xf32> to vector<1x96xf32>
    %8 = vector.extract_strided_slice %6 {offsets = [1, 0], sizes = [1, 32], strides = [1, 1]} : vector<8x96xf32> to vector<1x32xf32>
    %9 = vector.extract_strided_slice %6 {offsets = [2, 0], sizes = [1, 32], strides = [1, 1]} : vector<8x96xf32> to vector<1x32xf32>
    %10 = vector.extract_strided_slice %6 {offsets = [3, 0], sizes = [1, 32], strides = [1, 1]} : vector<8x96xf32> to vector<1x32xf32>
    %11 = vector.extract_strided_slice %6 {offsets = [4, 0], sizes = [1, 32], strides = [1, 1]} : vector<8x96xf32> to vector<1x32xf32>
    %12 = vector.extract_strided_slice %6 {offsets = [5, 0], sizes = [1, 32], strides = [1, 1]} : vector<8x96xf32> to vector<1x32xf32>
    %13 = vector.extract_strided_slice %6 {offsets = [6, 0], sizes = [1, 32], strides = [1, 1]} : vector<8x96xf32> to vector<1x32xf32>
    %14 = vector.extract_strided_slice %6 {offsets = [7, 0], sizes = [1, 32], strides = [1, 1]} : vector<8x96xf32> to vector<1x32xf32>
    %c0_5 = arith.constant 0 : index
    %c0_6 = arith.constant 0 : index
    %c0_7 = arith.constant 0 : index
    %15 = vector.load %arg3[%c0_5, %c0_6, %c0_7] : memref<1x32x96xbf16, #tpu.memory_space<vmem>>, vector<1x32x96xbf16>
    %16 = vector.shape_cast %15 : vector<1x32x96xbf16> to vector<32x96xbf16>
    %cst = arith.constant dense<0.000000e+00> : vector<8x96xf32>
    %17 = tpu.matmul %4, %16, %cst {dimension_numbers = #tpu.dot_dimension_numbers<[1], [0], [0], [1], [0, 0, 1, 1], [], []>} : vector<8x32xbf16>, vector<32x96xbf16>, vector<8x96xf32> -> vector<8x96xf32>
    %18 = vector.broadcast %7 : vector<1x96xf32> to vector<8x96xf32>
    %19 = arith.addf %17, %18 : vector<8x96xf32>
    %20 = vector.extract_strided_slice %19 {offsets = [0, 0], sizes = [8, 32], strides = [1, 1]} : vector<8x96xf32> to vector<8x32xf32>
    %21 = arith.truncf %20 : vector<8x32xf32> to vector<8x32xbf16>
    %22 = vector.extract_strided_slice %19 {offsets = [0, 32], sizes = [8, 32], strides = [1, 1]} : vector<8x96xf32> to vector<8x32xf32>
    %23 = arith.truncf %22 : vector<8x32xf32> to vector<8x32xbf16>
    %24 = vector.extract_strided_slice %19 {offsets = [0, 64], sizes = [8, 32], strides = [1, 1]} : vector<8x96xf32> to vector<8x32xf32>
    %25 = arith.truncf %24 : vector<8x32xf32> to vector<8x32xbf16>
    %26 = vector.extract_strided_slice %21 {offsets = [0, 0], sizes = [8, 4], strides = [1, 1]} : vector<8x32xbf16> to vector<8x4xbf16>
    %27 = vector.extract_strided_slice %23 {offsets = [0, 0], sizes = [8, 4], strides = [1, 1]} : vector<8x32xbf16> to vector<8x4xbf16>
    %cst_8 = arith.constant dense<0.000000e+00> : vector<8x8xf32>
    %28 = tpu.matmul %26, %27, %cst_8 {dimension_numbers = #tpu.dot_dimension_numbers<[1], [1], [0], [0], [0, 0, 1, 0], [], []>} : vector<8x4xbf16>, vector<8x4xbf16>, vector<8x8xf32> -> vector<8x8xf32>
    %cst_9 = arith.constant dense<0xFF800000> : vector<8xf32>
    %29 = vector.multi_reduction <maximumf>, %28, %cst_9 [1] : vector<8x8xf32> to vector<8xf32>
    %30 = vector.shape_cast %29 : vector<8xf32> to vector<8x1xf32>
    %31 = vector.broadcast %30 : vector<8x1xf32> to vector<8x8xf32>
    %32 = arith.subf %28, %31 : vector<8x8xf32>
    %33 = math.exp %32 : vector<8x8xf32>
    %cst_10 = arith.constant dense<0.000000e+00> : vector<8xf32>
    %34 = vector.multi_reduction <add>, %33, %cst_10 [1] : vector<8x8xf32> to vector<8xf32>
    %35 = vector.shape_cast %34 : vector<8xf32> to vector<8x1xf32>
    %36 = tpu.reciprocal %35 {approx = true} : vector<8x1xf32> -> vector<8x1xf32>
    %37 = vector.broadcast %36 : vector<8x1xf32> to vector<8x8xf32>
    %38 = arith.mulf %33, %37 : vector<8x8xf32>
    %39 = arith.truncf %38 : vector<8x8xf32> to vector<8x8xbf16>
    %40 = vector.extract_strided_slice %25 {offsets = [0, 0], sizes = [8, 4], strides = [1, 1]} : vector<8x32xbf16> to vector<8x4xbf16>
    %cst_11 = arith.constant dense<0.000000e+00> : vector<8x4xf32>
    %41 = tpu.matmul %39, %40, %cst_11 {dimension_numbers = #tpu.dot_dimension_numbers<[1], [0], [0], [1], [0, 0, 1, 1], [], []>} : vector<8x8xbf16>, vector<8x4xbf16>, vector<8x4xf32> -> vector<8x4xf32>
    %42 = arith.truncf %41 : vector<8x4xf32> to vector<8x4xbf16>
    %c0_12 = arith.constant 0 : index
    %c0_13 = arith.constant 0 : index
    %43 = vector.load %arg11[%c0_12, %c0_13] : memref<8x32xbf16, #tpu.memory_space<vmem>>, vector<8x4xbf16>
    tpu.vector_store %arg11[%c0_12, %c0_13], %42 {strides = array<i32>} : memref<8x32xbf16, #tpu.memory_space<vmem>>, vector<8x4xbf16>,
    %44 = vector.extract_strided_slice %21 {offsets = [0, 4], sizes = [8, 4], strides = [1, 1]} : vector<8x32xbf16> to vector<8x4xbf16>
    %45 = vector.extract_strided_slice %23 {offsets = [0, 4], sizes = [8, 4], strides = [1, 1]} : vector<8x32xbf16> to vector<8x4xbf16>
    %cst_14 = arith.constant dense<0.000000e+00> : vector<8x8xf32>
    %46 = tpu.matmul %44, %45, %cst_14 {dimension_numbers = #tpu.dot_dimension_numbers<[1], [1], [0], [0], [0, 0, 1, 0], [], []>} : vector<8x4xbf16>, vector<8x4xbf16>, vector<8x8xf32> -> vector<8x8xf32>
    %cst_15 = arith.constant dense<0xFF800000> : vector<8xf32>
    %47 = vector.multi_reduction <maximumf>, %46, %cst_15 [1] : vector<8x8xf32> to vector<8xf32>
    %48 = vector.shape_cast %47 : vector<8xf32> to vector<8x1xf32>
    %49 = vector.broadcast %48 : vector<8x1xf32> to vector<8x8xf32>
    %50 = arith.subf %46, %49 : vector<8x8xf32>
    %51 = math.exp %50 : vector<8x8xf32>
    %cst_16 = arith.constant dense<0.000000e+00> : vector<8xf32>
    %52 = vector.multi_reduction <add>, %51, %cst_16 [1] : vector<8x8xf32> to vector<8xf32>
    %53 = vector.shape_cast %52 : vector<8xf32> to vector<8x1xf32>
    %54 = tpu.reciprocal %53 {approx = true} : vector<8x1xf32> -> vector<8x1xf32>
    %55 = vector.broadcast %54 : vector<8x1xf32> to vector<8x8xf32>
    %56 = arith.mulf %51, %55 : vector<8x8xf32>
    %57 = arith.truncf %56 : vector<8x8xf32> to vector<8x8xbf16>
    %58 = vector.extract_strided_slice %25 {offsets = [0, 4], sizes = [8, 4], strides = [1, 1]} : vector<8x32xbf16> to vector<8x4xbf16>
    %cst_17 = arith.constant dense<0.000000e+00> : vector<8x4xf32>
    %59 = tpu.matmul %57, %58, %cst_17 {dimension_numbers = #tpu.dot_dimension_numbers<[1], [0], [0], [1], [0, 0, 1, 1], [], []>} : vector<8x8xbf16>, vector<8x4xbf16>, vector<8x4xf32> -> vector<8x4xf32>
    %60 = arith.truncf %59 : vector<8x4xf32> to vector<8x4xbf16>
    %c0_18 = arith.constant 0 : index
    %c4 = arith.constant 4 : index
    %61 = vector.load %arg11[%c0_18, %c4] : memref<8x32xbf16, #tpu.memory_space<vmem>>, vector<8x4xbf16>
    tpu.vector_store %arg11[%c0_18, %c4], %60 {strides = array<i32>} : memref<8x32xbf16, #tpu.memory_space<vmem>>, vector<8x4xbf16>,
    %62 = vector.extract_strided_slice %21 {offsets = [0, 8], sizes = [8, 4], strides = [1, 1]} : vector<8x32xbf16> to vector<8x4xbf16>
    %63 = vector.extract_strided_slice %23 {offsets = [0, 8], sizes = [8, 4], strides = [1, 1]} : vector<8x32xbf16> to vector<8x4xbf16>
    %cst_19 = arith.constant dense<0.000000e+00> : vector<8x8xf32>
    %64 = tpu.matmul %62, %63, %cst_19 {dimension_numbers = #tpu.dot_dimension_numbers<[1], [1], [0], [0], [0, 0, 1, 0], [], []>} : vector<8x4xbf16>, vector<8x4xbf16>, vector<8x8xf32> -> vector<8x8xf32>
    %cst_20 = arith.constant dense<0xFF800000> : vector<8xf32>
    %65 = vector.multi_reduction <maximumf>, %64, %cst_20 [1] : vector<8x8xf32> to vector<8xf32>
    %66 = vector.shape_cast %65 : vector<8xf32> to vector<8x1xf32>
    %67 = vector.broadcast %66 : vector<8x1xf32> to vector<8x8xf32>
    %68 = arith.subf %64, %67 : vector<8x8xf32>
    %69 = math.exp %68 : vector<8x8xf32>
    %cst_21 = arith.constant dense<0.000000e+00> : vector<8xf32>
    %70 = vector.multi_reduction <add>, %69, %cst_21 [1] : vector<8x8xf32> to vector<8xf32>
    %71 = vector.shape_cast %70 : vector<8xf32> to vector<8x1xf32>
    %72 = tpu.reciprocal %71 {approx = true} : vector<8x1xf32> -> vector<8x1xf32>
    %73 = vector.broadcast %72 : vector<8x1xf32> to vector<8x8xf32>
    %74 = arith.mulf %69, %73 : vector<8x8xf32>
    %75 = arith.truncf %74 : vector<8x8xf32> to vector<8x8xbf16>
    %76 = vector.extract_strided_slice %25 {offsets = [0, 8], sizes = [8, 4], strides = [1, 1]} : vector<8x32xbf16> to vector<8x4xbf16>
    %cst_22 = arith.constant dense<0.000000e+00> : vector<8x4xf32>
    %77 = tpu.matmul %75, %76, %cst_22 {dimension_numbers = #tpu.dot_dimension_numbers<[1], [0], [0], [1], [0, 0, 1, 1], [], []>} : vector<8x8xbf16>, vector<8x4xbf16>, vector<8x4xf32> -> vector<8x4xf32>
    %78 = arith.truncf %77 : vector<8x4xf32> to vector<8x4xbf16>
    %c0_23 = arith.constant 0 : index
    %c8 = arith.constant 8 : index
    %79 = vector.load %arg11[%c0_23, %c8] : memref<8x32xbf16, #tpu.memory_space<vmem>>, vector<8x4xbf16>
    tpu.vector_store %arg11[%c0_23, %c8], %78 {strides = array<i32>} : memref<8x32xbf16, #tpu.memory_space<vmem>>, vector<8x4xbf16>,
    %80 = vector.extract_strided_slice %21 {offsets = [0, 12], sizes = [8, 4], strides = [1, 1]} : vector<8x32xbf16> to vector<8x4xbf16>
    %81 = vector.extract_strided_slice %23 {offsets = [0, 12], sizes = [8, 4], strides = [1, 1]} : vector<8x32xbf16> to vector<8x4xbf16>
    %cst_24 = arith.constant dense<0.000000e+00> : vector<8x8xf32>
    %82 = tpu.matmul %80, %81, %cst_24 {dimension_numbers = #tpu.dot_dimension_numbers<[1], [1], [0], [0], [0, 0, 1, 0], [], []>} : vector<8x4xbf16>, vector<8x4xbf16>, vector<8x8xf32> -> vector<8x8xf32>
    %cst_25 = arith.constant dense<0xFF800000> : vector<8xf32>
    %83 = vector.multi_reduction <maximumf>, %82, %cst_25 [1] : vector<8x8xf32> to vector<8xf32>
    %84 = vector.shape_cast %83 : vector<8xf32> to vector<8x1xf32>
    %85 = vector.broadcast %84 : vector<8x1xf32> to vector<8x8xf32>
    %86 = arith.subf %82, %85 : vector<8x8xf32>
    %87 = math.exp %86 : vector<8x8xf32>
    %cst_26 = arith.constant dense<0.000000e+00> : vector<8xf32>
    %88 = vector.multi_reduction <add>, %87, %cst_26 [1] : vector<8x8xf32> to vector<8xf32>
    %89 = vector.shape_cast %88 : vector<8xf32> to vector<8x1xf32>
    %90 = tpu.reciprocal %89 {approx = true} : vector<8x1xf32> -> vector<8x1xf32>
    %91 = vector.broadcast %90 : vector<8x1xf32> to vector<8x8xf32>
    %92 = arith.mulf %87, %91 : vector<8x8xf32>
    %93 = arith.truncf %92 : vector<8x8xf32> to vector<8x8xbf16>
    %94 = vector.extract_strided_slice %25 {offsets = [0, 12], sizes = [8, 4], strides = [1, 1]} : vector<8x32xbf16> to vector<8x4xbf16>
    %cst_27 = arith.constant dense<0.000000e+00> : vector<8x4xf32>
    %95 = tpu.matmul %93, %94, %cst_27 {dimension_numbers = #tpu.dot_dimension_numbers<[1], [0], [0], [1], [0, 0, 1, 1], [], []>} : vector<8x8xbf16>, vector<8x4xbf16>, vector<8x4xf32> -> vector<8x4xf32>
    %96 = arith.truncf %95 : vector<8x4xf32> to vector<8x4xbf16>
    %c0_28 = arith.constant 0 : index
    %c12 = arith.constant 12 : index
    %97 = vector.load %arg11[%c0_28, %c12] : memref<8x32xbf16, #tpu.memory_space<vmem>>, vector<8x4xbf16>
    tpu.vector_store %arg11[%c0_28, %c12], %96 {strides = array<i32>} : memref<8x32xbf16, #tpu.memory_space<vmem>>, vector<8x4xbf16>,
    %98 = vector.extract_strided_slice %21 {offsets = [0, 16], sizes = [8, 4], strides = [1, 1]} : vector<8x32xbf16> to vector<8x4xbf16>
    %99 = vector.extract_strided_slice %23 {offsets = [0, 16], sizes = [8, 4], strides = [1, 1]} : vector<8x32xbf16> to vector<8x4xbf16>
    %cst_29 = arith.constant dense<0.000000e+00> : vector<8x8xf32>
    %100 = tpu.matmul %98, %99, %cst_29 {dimension_numbers = #tpu.dot_dimension_numbers<[1], [1], [0], [0], [0, 0, 1, 0], [], []>} : vector<8x4xbf16>, vector<8x4xbf16>, vector<8x8xf32> -> vector<8x8xf32>
    %cst_30 = arith.constant dense<0xFF800000> : vector<8xf32>
    %101 = vector.multi_reduction <maximumf>, %100, %cst_30 [1] : vector<8x8xf32> to vector<8xf32>
    %102 = vector.shape_cast %101 : vector<8xf32> to vector<8x1xf32>
    %103 = vector.broadcast %102 : vector<8x1xf32> to vector<8x8xf32>
    %104 = arith.subf %100, %103 : vector<8x8xf32>
    %105 = math.exp %104 : vector<8x8xf32>
    %cst_31 = arith.constant dense<0.000000e+00> : vector<8xf32>
    %106 = vector.multi_reduction <add>, %105, %cst_31 [1] : vector<8x8xf32> to vector<8xf32>
    %107 = vector.shape_cast %106 : vector<8xf32> to vector<8x1xf32>
    %108 = tpu.reciprocal %107 {approx = true} : vector<8x1xf32> -> vector<8x1xf32>
    %109 = vector.broadcast %108 : vector<8x1xf32> to vector<8x8xf32>
    %110 = arith.mulf %105, %109 : vector<8x8xf32>
    %111 = arith.truncf %110 : vector<8x8xf32> to vector<8x8xbf16>
    %112 = vector.extract_strided_slice %25 {offsets = [0, 16], sizes = [8, 4], strides = [1, 1]} : vector<8x32xbf16> to vector<8x4xbf16>
    %cst_32 = arith.constant dense<0.000000e+00> : vector<8x4xf32>
    %113 = tpu.matmul %111, %112, %cst_32 {dimension_numbers = #tpu.dot_dimension_numbers<[1], [0], [0], [1], [0, 0, 1, 1], [], []>} : vector<8x8xbf16>, vector<8x4xbf16>, vector<8x4xf32> -> vector<8x4xf32>
    %114 = arith.truncf %113 : vector<8x4xf32> to vector<8x4xbf16>
    %c0_33 = arith.constant 0 : index
    %c16 = arith.constant 16 : index
    %115 = vector.load %arg11[%c0_33, %c16] : memref<8x32xbf16, #tpu.memory_space<vmem>>, vector<8x4xbf16>
    tpu.vector_store %arg11[%c0_33, %c16], %114 {strides = array<i32>} : memref<8x32xbf16, #tpu.memory_space<vmem>>, vector<8x4xbf16>,
    %116 = vector.extract_strided_slice %21 {offsets = [0, 20], sizes = [8, 4], strides = [1, 1]} : vector<8x32xbf16> to vector<8x4xbf16>
    %117 = vector.extract_strided_slice %23 {offsets = [0, 20], sizes = [8, 4], strides = [1, 1]} : vector<8x32xbf16> to vector<8x4xbf16>
    %cst_34 = arith.constant dense<0.000000e+00> : vector<8x8xf32>
    %118 = tpu.matmul %116, %117, %cst_34 {dimension_numbers = #tpu.dot_dimension_numbers<[1], [1], [0], [0], [0, 0, 1, 0], [], []>} : vector<8x4xbf16>, vector<8x4xbf16>, vector<8x8xf32> -> vector<8x8xf32>
    %cst_35 = arith.constant dense<0xFF800000> : vector<8xf32>
    %119 = vector.multi_reduction <maximumf>, %118, %cst_35 [1] : vector<8x8xf32> to vector<8xf32>
    %120 = vector.shape_cast %119 : vector<8xf32> to vector<8x1xf32>
    %121 = vector.broadcast %120 : vector<8x1xf32> to vector<8x8xf32>
    %122 = arith.subf %118, %121 : vector<8x8xf32>
    %123 = math.exp %122 : vector<8x8xf32>
    %cst_36 = arith.constant dense<0.000000e+00> : vector<8xf32>
    %124 = vector.multi_reduction <add>, %123, %cst_36 [1] : vector<8x8xf32> to vector<8xf32>
    %125 = vector.shape_cast %124 : vector<8xf32> to vector<8x1xf32>
    %126 = tpu.reciprocal %125 {approx = true} : vector<8x1xf32> -> vector<8x1xf32>
    %127 = vector.broadcast %126 : vector<8x1xf32> to vector<8x8xf32>
    %128 = arith.mulf %123, %127 : vector<8x8xf32>
    %129 = arith.truncf %128 : vector<8x8xf32> to vector<8x8xbf16>
    %130 = vector.extract_strided_slice %25 {offsets = [0, 20], sizes = [8, 4], strides = [1, 1]} : vector<8x32xbf16> to vector<8x4xbf16>
    %cst_37 = arith.constant dense<0.000000e+00> : vector<8x4xf32>
    %131 = tpu.matmul %129, %130, %cst_37 {dimension_numbers = #tpu.dot_dimension_numbers<[1], [0], [0], [1], [0, 0, 1, 1], [], []>} : vector<8x8xbf16>, vector<8x4xbf16>, vector<8x4xf32> -> vector<8x4xf32>
    %132 = arith.truncf %131 : vector<8x4xf32> to vector<8x4xbf16>
    %c0_38 = arith.constant 0 : index
    %c20 = arith.constant 20 : index
    %133 = vector.load %arg11[%c0_38, %c20] : memref<8x32xbf16, #tpu.memory_space<vmem>>, vector<8x4xbf16>
    tpu.vector_store %arg11[%c0_38, %c20], %132 {strides = array<i32>} : memref<8x32xbf16, #tpu.memory_space<vmem>>, vector<8x4xbf16>,
    %134 = vector.extract_strided_slice %21 {offsets = [0, 24], sizes = [8, 4], strides = [1, 1]} : vector<8x32xbf16> to vector<8x4xbf16>
    %135 = vector.extract_strided_slice %23 {offsets = [0, 24], sizes = [8, 4], strides = [1, 1]} : vector<8x32xbf16> to vector<8x4xbf16>
    %cst_39 = arith.constant dense<0.000000e+00> : vector<8x8xf32>
    %136 = tpu.matmul %134, %135, %cst_39 {dimension_numbers = #tpu.dot_dimension_numbers<[1], [1], [0], [0], [0, 0, 1, 0], [], []>} : vector<8x4xbf16>, vector<8x4xbf16>, vector<8x8xf32> -> vector<8x8xf32>
    %cst_40 = arith.constant dense<0xFF800000> : vector<8xf32>
    %137 = vector.multi_reduction <maximumf>, %136, %cst_40 [1] : vector<8x8xf32> to vector<8xf32>
    %138 = vector.shape_cast %137 : vector<8xf32> to vector<8x1xf32>
    %139 = vector.broadcast %138 : vector<8x1xf32> to vector<8x8xf32>
    %140 = arith.subf %136, %139 : vector<8x8xf32>
    %141 = math.exp %140 : vector<8x8xf32>
    %cst_41 = arith.constant dense<0.000000e+00> : vector<8xf32>
    %142 = vector.multi_reduction <add>, %141, %cst_41 [1] : vector<8x8xf32> to vector<8xf32>
    %143 = vector.shape_cast %142 : vector<8xf32> to vector<8x1xf32>
    %144 = tpu.reciprocal %143 {approx = true} : vector<8x1xf32> -> vector<8x1xf32>
    %145 = vector.broadcast %144 : vector<8x1xf32> to vector<8x8xf32>
    %146 = arith.mulf %141, %145 : vector<8x8xf32>
    %147 = arith.truncf %146 : vector<8x8xf32> to vector<8x8xbf16>
    %148 = vector.extract_strided_slice %25 {offsets = [0, 24], sizes = [8, 4], strides = [1, 1]} : vector<8x32xbf16> to vector<8x4xbf16>
    %cst_42 = arith.constant dense<0.000000e+00> : vector<8x4xf32>
    %149 = tpu.matmul %147, %148, %cst_42 {dimension_numbers = #tpu.dot_dimension_numbers<[1], [0], [0], [1], [0, 0, 1, 1], [], []>} : vector<8x8xbf16>, vector<8x4xbf16>, vector<8x4xf32> -> vector<8x4xf32>
    %150 = arith.truncf %149 : vector<8x4xf32> to vector<8x4xbf16>
    %c0_43 = arith.constant 0 : index
    %c24 = arith.constant 24 : index
    %151 = vector.load %arg11[%c0_43, %c24] : memref<8x32xbf16, #tpu.memory_space<vmem>>, vector<8x4xbf16>
    tpu.vector_store %arg11[%c0_43, %c24], %150 {strides = array<i32>} : memref<8x32xbf16, #tpu.memory_space<vmem>>, vector<8x4xbf16>,
    %152 = vector.extract_strided_slice %21 {offsets = [0, 28], sizes = [8, 4], strides = [1, 1]} : vector<8x32xbf16> to vector<8x4xbf16>
    %153 = vector.extract_strided_slice %23 {offsets = [0, 28], sizes = [8, 4], strides = [1, 1]} : vector<8x32xbf16> to vector<8x4xbf16>
    %cst_44 = arith.constant dense<0.000000e+00> : vector<8x8xf32>
    %154 = tpu.matmul %152, %153, %cst_44 {dimension_numbers = #tpu.dot_dimension_numbers<[1], [1], [0], [0], [0, 0, 1, 0], [], []>} : vector<8x4xbf16>, vector<8x4xbf16>, vector<8x8xf32> -> vector<8x8xf32>
    %cst_45 = arith.constant dense<0xFF800000> : vector<8xf32>
    %155 = vector.multi_reduction <maximumf>, %154, %cst_45 [1] : vector<8x8xf32> to vector<8xf32>
    %156 = vector.shape_cast %155 : vector<8xf32> to vector<8x1xf32>
    %157 = vector.broadcast %156 : vector<8x1xf32> to vector<8x8xf32>
    %158 = arith.subf %154, %157 : vector<8x8xf32>
    %159 = math.exp %158 : vector<8x8xf32>
    %cst_46 = arith.constant dense<0.000000e+00> : vector<8xf32>
    %160 = vector.multi_reduction <add>, %159, %cst_46 [1] : vector<8x8xf32> to vector<8xf32>
    %161 = vector.shape_cast %160 : vector<8xf32> to vector<8x1xf32>
    %162 = tpu.reciprocal %161 {approx = true} : vector<8x1xf32> -> vector<8x1xf32>
    %163 = vector.broadcast %162 : vector<8x1xf32> to vector<8x8xf32>
    %164 = arith.mulf %159, %163 : vector<8x8xf32>
    %165 = arith.truncf %164 : vector<8x8xf32> to vector<8x8xbf16>
    %166 = vector.extract_strided_slice %25 {offsets = [0, 28], sizes = [8, 4], strides = [1, 1]} : vector<8x32xbf16> to vector<8x4xbf16>
    %cst_47 = arith.constant dense<0.000000e+00> : vector<8x4xf32>
    %167 = tpu.matmul %165, %166, %cst_47 {dimension_numbers = #tpu.dot_dimension_numbers<[1], [0], [0], [1], [0, 0, 1, 1], [], []>} : vector<8x8xbf16>, vector<8x4xbf16>, vector<8x4xf32> -> vector<8x4xf32>
    %168 = arith.truncf %167 : vector<8x4xf32> to vector<8x4xbf16>
    %c0_48 = arith.constant 0 : index
    %c28 = arith.constant 28 : index
    %169 = vector.load %arg11[%c0_48, %c28] : memref<8x32xbf16, #tpu.memory_space<vmem>>, vector<8x4xbf16>
    tpu.vector_store %arg11[%c0_48, %c28], %168 {strides = array<i32>} : memref<8x32xbf16, #tpu.memory_space<vmem>>, vector<8x4xbf16>,
    %c0_49 = arith.constant 0 : index
    %c0_50 = arith.constant 0 : index
    %170 = vector.load %arg11[%c0_49, %c0_50] : memref<8x32xbf16, #tpu.memory_space<vmem>>, vector<8x32xbf16>
    %c0_51 = arith.constant 0 : index
    %c0_52 = arith.constant 0 : index
    %c0_53 = arith.constant 0 : index
    %171 = vector.load %arg4[%c0_51, %c0_52, %c0_53] : memref<1x32x32xbf16, #tpu.memory_space<vmem>>, vector<1x32x32xbf16>
    %172 = vector.shape_cast %171 : vector<1x32x32xbf16> to vector<32x32xbf16>
    %cst_54 = arith.constant dense<0.000000e+00> : vector<8x32xf32>
    %173 = tpu.matmul %170, %172, %cst_54 {dimension_numbers = #tpu.dot_dimension_numbers<[1], [0], [0], [1], [0, 0, 1, 1], [], []>} : vector<8x32xbf16>, vector<32x32xbf16>, vector<8x32xf32> -> vector<8x32xf32>
    %174 = vector.broadcast %8 : vector<1x32xf32> to vector<8x32xf32>
    %175 = arith.addf %173, %174 : vector<8x32xf32>
    %176 = arith.addf %3, %175 : vector<8x32xf32>
    %cst_55 = arith.constant dense<0.000000e+00> : vector<8xf32>
    %177 = vector.multi_reduction <add>, %176, %cst_55 [1] : vector<8x32xf32> to vector<8xf32>
    %178 = vector.shape_cast %177 : vector<8xf32> to vector<8x1xf32>
    %cst_56 = arith.constant 3.200000e+01 : f32
    %179 = vector.broadcast %cst_56 : f32 to vector<8x1xf32>
    %180 = arith.divf %178, %179 : vector<8x1xf32>
    %181 = vector.broadcast %180 : vector<8x1xf32> to vector<8x32xf32>
    %182 = arith.subf %176, %181 : vector<8x32xf32>
    %183 = arith.mulf %182, %182 : vector<8x32xf32>
    %cst_57 = arith.constant dense<0.000000e+00> : vector<8xf32>
    %184 = vector.multi_reduction <add>, %183, %cst_57 [1] : vector<8x32xf32> to vector<8xf32>
    %185 = vector.shape_cast %184 : vector<8xf32> to vector<8x1xf32>
    %cst_58 = arith.constant 3.200000e+01 : f32
    %186 = vector.broadcast %cst_58 : f32 to vector<8x1xf32>
    %187 = arith.divf %185, %186 : vector<8x1xf32>
    %188 = vector.broadcast %180 : vector<8x1xf32> to vector<8x32xf32>
    %189 = arith.subf %176, %188 : vector<8x32xf32>
    %cst_59 = arith.constant 9.99999974E-6 : f32
    %190 = vector.broadcast %cst_59 : f32 to vector<8x1xf32>
    %191 = arith.addf %187, %190 : vector<8x1xf32>
    %192 = math.rsqrt %191 : vector<8x1xf32>
    %193 = vector.broadcast %192 : vector<8x1xf32> to vector<8x32xf32>
    %194 = arith.mulf %189, %193 : vector<8x32xf32>
    %195 = vector.broadcast %11 : vector<1x32xf32> to vector<8x32xf32>
    %196 = arith.mulf %194, %195 : vector<8x32xf32>
    %197 = vector.broadcast %12 : vector<1x32xf32> to vector<8x32xf32>
    %198 = arith.addf %196, %197 : vector<8x32xf32>
    %199 = arith.truncf %198 : vector<8x32xf32> to vector<8x32xbf16>
    %c0_60 = arith.constant 0 : index
    %c0_61 = arith.constant 0 : index
    %c0_62 = arith.constant 0 : index
    %200 = vector.load %arg5[%c0_60, %c0_61, %c0_62] : memref<1x32x32xbf16, #tpu.memory_space<vmem>>, vector<1x32x32xbf16>
    %201 = vector.shape_cast %200 : vector<1x32x32xbf16> to vector<32x32xbf16>
    %cst_63 = arith.constant dense<0.000000e+00> : vector<8x32xf32>
    %202 = tpu.matmul %199, %201, %cst_63 {dimension_numbers = #tpu.dot_dimension_numbers<[1], [0], [0], [1], [0, 0, 1, 1], [], []>} : vector<8x32xbf16>, vector<32x32xbf16>, vector<8x32xf32> -> vector<8x32xf32>
    %203 = vector.broadcast %9 : vector<1x32xf32> to vector<8x32xf32>
    %204 = arith.addf %202, %203 : vector<8x32xf32>
    %cst_64 = arith.constant 0.707106769 : f32
    %205 = vector.broadcast %cst_64 : f32 to vector<8x32xf32>
    %206 = arith.mulf %204, %205 : vector<8x32xf32>
    %207 = math.absf %206 : vector<8x32xf32>
    %cst_65 = arith.constant 0.327591091 : f32
    %208 = vector.broadcast %cst_65 : f32 to vector<8x32xf32>
    %209 = arith.mulf %208, %207 : vector<8x32xf32>
    %cst_66 = arith.constant 1.000000e+00 : f32
    %210 = vector.broadcast %cst_66 : f32 to vector<8x32xf32>
    %211 = arith.addf %210, %209 : vector<8x32xf32>
    %212 = tpu.reciprocal %211 {approx = true} : vector<8x32xf32> -> vector<8x32xf32>
    %cst_67 = arith.constant 1.06140542 : f32
    %213 = vector.broadcast %cst_67 : f32 to vector<8x32xf32>
    %214 = arith.mulf %213, %212 : vector<8x32xf32>
    %cst_68 = arith.constant -1.45315206 : f32
    %215 = vector.broadcast %cst_68 : f32 to vector<8x32xf32>
    %216 = arith.addf %214, %215 : vector<8x32xf32>
    %217 = arith.mulf %216, %212 : vector<8x32xf32>
    %cst_69 = arith.constant 1.42141378 : f32
    %218 = vector.broadcast %cst_69 : f32 to vector<8x32xf32>
    %219 = arith.addf %217, %218 : vector<8x32xf32>
    %220 = arith.mulf %219, %212 : vector<8x32xf32>
    %cst_70 = arith.constant -0.284496725 : f32
    %221 = vector.broadcast %cst_70 : f32 to vector<8x32xf32>
    %222 = arith.addf %220, %221 : vector<8x32xf32>
    %223 = arith.mulf %222, %212 : vector<8x32xf32>
    %cst_71 = arith.constant 0.254829586 : f32
    %224 = vector.broadcast %cst_71 : f32 to vector<8x32xf32>
    %225 = arith.addf %223, %224 : vector<8x32xf32>
    %226 = arith.mulf %225, %212 : vector<8x32xf32>
    %cst_72 = arith.constant 0.000000e+00 : f32
    %227 = vector.broadcast %cst_72 : f32 to vector<8x32xf32>
    %228 = arith.subf %227, %207 : vector<8x32xf32>
    %229 = arith.mulf %228, %207 : vector<8x32xf32>
    %230 = math.exp %229 : vector<8x32xf32>
    %231 = arith.mulf %226, %230 : vector<8x32xf32>
    %cst_73 = arith.constant 1.000000e+00 : f32
    %232 = vector.broadcast %cst_73 : f32 to vector<8x32xf32>
    %233 = arith.subf %232, %231 : vector<8x32xf32>
    %cst_74 = arith.constant 0.000000e+00 : f32
    %234 = vector.broadcast %cst_74 : f32 to vector<8x32xf32>
    %235 = arith.cmpf olt, %206, %234 : vector<8x32xf32>
    %cst_75 = arith.constant 0.000000e+00 : f32
    %236 = vector.broadcast %cst_75 : f32 to vector<8x32xf32>
    %237 = arith.subf %236, %233 : vector<8x32xf32>
    %238 = arith.select %235, %237, %233 : vector<8x32xi1>, vector<8x32xf32>
    %cst_76 = arith.constant 5.000000e-01 : f32
    %239 = vector.broadcast %cst_76 : f32 to vector<8x32xf32>
    %240 = arith.mulf %239, %204 : vector<8x32xf32>
    %cst_77 = arith.constant 1.000000e+00 : f32
    %241 = vector.broadcast %cst_77 : f32 to vector<8x32xf32>
    %242 = arith.addf %241, %238 : vector<8x32xf32>
    %243 = arith.mulf %240, %242 : vector<8x32xf32>
    %244 = arith.truncf %243 : vector<8x32xf32> to vector<8x32xbf16>
    %c0_78 = arith.constant 0 : index
    %c0_79 = arith.constant 0 : index
    %c0_80 = arith.constant 0 : index
    %245 = vector.load %arg6[%c0_78, %c0_79, %c0_80] : memref<1x32x32xbf16, #tpu.memory_space<vmem>>, vector<1x32x32xbf16>
    %246 = vector.shape_cast %245 : vector<1x32x32xbf16> to vector<32x32xbf16>
    %cst_81 = arith.constant dense<0.000000e+00> : vector<8x32xf32>
    %247 = tpu.matmul %244, %246, %cst_81 {dimension_numbers = #tpu.dot_dimension_numbers<[1], [0], [0], [1], [0, 0, 1, 1], [], []>} : vector<8x32xbf16>, vector<32x32xbf16>, vector<8x32xf32> -> vector<8x32xf32>
    %248 = vector.broadcast %10 : vector<1x32xf32> to vector<8x32xf32>
    %249 = arith.addf %247, %248 : vector<8x32xf32>
    %250 = arith.addf %198, %249 : vector<8x32xf32>
    %cst_82 = arith.constant dense<0.000000e+00> : vector<8xf32>
    %251 = vector.multi_reduction <add>, %250, %cst_82 [1] : vector<8x32xf32> to vector<8xf32>
    %252 = vector.shape_cast %251 : vector<8xf32> to vector<8x1xf32>
    %cst_83 = arith.constant 3.200000e+01 : f32
    %253 = vector.broadcast %cst_83 : f32 to vector<8x1xf32>
    %254 = arith.divf %252, %253 : vector<8x1xf32>
    %255 = vector.broadcast %254 : vector<8x1xf32> to vector<8x32xf32>
    %256 = arith.subf %250, %255 : vector<8x32xf32>
    %257 = arith.mulf %256, %256 : vector<8x32xf32>
    %cst_84 = arith.constant dense<0.000000e+00> : vector<8xf32>
    %258 = vector.multi_reduction <add>, %257, %cst_84 [1] : vector<8x32xf32> to vector<8xf32>
    %259 = vector.shape_cast %258 : vector<8xf32> to vector<8x1xf32>
    %cst_85 = arith.constant 3.200000e+01 : f32
    %260 = vector.broadcast %cst_85 : f32 to vector<8x1xf32>
    %261 = arith.divf %259, %260 : vector<8x1xf32>
    %262 = vector.broadcast %254 : vector<8x1xf32> to vector<8x32xf32>
    %263 = arith.subf %250, %262 : vector<8x32xf32>
    %cst_86 = arith.constant 9.99999974E-6 : f32
    %264 = vector.broadcast %cst_86 : f32 to vector<8x1xf32>
    %265 = arith.addf %261, %264 : vector<8x1xf32>
    %266 = math.rsqrt %265 : vector<8x1xf32>
    %267 = vector.broadcast %266 : vector<8x1xf32> to vector<8x32xf32>
    %268 = arith.mulf %263, %267 : vector<8x32xf32>
    %269 = vector.broadcast %13 : vector<1x32xf32> to vector<8x32xf32>
    %270 = arith.mulf %268, %269 : vector<8x32xf32>
    %271 = vector.broadcast %14 : vector<1x32xf32> to vector<8x32xf32>
    %272 = arith.addf %270, %271 : vector<8x32xf32>
    %c1_i32 = arith.constant 1 : i32
    %273 = arith.cmpi ne, %arg1, %c1_i32 : i32
    %274 = arith.extui %273 : i1 to i32
    %c0_i32_87 = arith.constant 0 : i32
    %275 = arith.cmpi ne, %274, %c0_i32_87 : i32
    scf.if %275 {
      %c0_90 = arith.constant 0 : index
      %c0_91 = arith.constant 0 : index
      %279 = vector.load %arg10[%c0_90, %c0_91] : memref<8x32xf32, #tpu.memory_space<vmem>>, vector<8x32xf32>
      tpu.vector_store %arg10[%c0_90, %c0_91], %272 {strides = array<i32>} : memref<8x32xf32, #tpu.memory_space<vmem>>, vector<8x32xf32>,
    } else {
    }
    %c1_i32_88 = arith.constant 1 : i32
    %276 = arith.cmpi eq, %arg1, %c1_i32_88 : i32
    %277 = arith.extui %276 : i1 to i32
    %c0_i32_89 = arith.constant 0 : i32
    %278 = arith.cmpi ne, %277, %c0_i32_89 : i32
    scf.if %278 {
      %c0_90 = arith.constant 0 : index
      %c0_91 = arith.constant 0 : index
      %279 = vector.load %arg8[%c0_90, %c0_91] : memref<1x32xf32, #tpu.memory_space<vmem>>, vector<1x32xf32>
      %c0_92 = arith.constant 0 : index
      %c0_93 = arith.constant 0 : index
      %280 = vector.load %arg9[%c0_92, %c0_93] : memref<1x32xf32, #tpu.memory_space<vmem>>, vector<1x32xf32>
      %cst_94 = arith.constant dense<0.000000e+00> : vector<8xf32>
      %281 = vector.multi_reduction <add>, %272, %cst_94 [1] : vector<8x32xf32> to vector<8xf32>
      %282 = vector.shape_cast %281 : vector<8xf32> to vector<8x1xf32>
      %cst_95 = arith.constant 3.200000e+01 : f32
      %283 = vector.broadcast %cst_95 : f32 to vector<8x1xf32>
      %284 = arith.divf %282, %283 : vector<8x1xf32>
      %285 = vector.broadcast %284 : vector<8x1xf32> to vector<8x32xf32>
      %286 = arith.subf %272, %285 : vector<8x32xf32>
      %287 = arith.mulf %286, %286 : vector<8x32xf32>
      %cst_96 = arith.constant dense<0.000000e+00> : vector<8xf32>
      %288 = vector.multi_reduction <add>, %287, %cst_96 [1] : vector<8x32xf32> to vector<8xf32>
      %289 = vector.shape_cast %288 : vector<8xf32> to vector<8x1xf32>
      %cst_97 = arith.constant 3.200000e+01 : f32
      %290 = vector.broadcast %cst_97 : f32 to vector<8x1xf32>
      %291 = arith.divf %289, %290 : vector<8x1xf32>
      %292 = vector.broadcast %284 : vector<8x1xf32> to vector<8x32xf32>
      %293 = arith.subf %272, %292 : vector<8x32xf32>
      %cst_98 = arith.constant 9.99999974E-6 : f32
      %294 = vector.broadcast %cst_98 : f32 to vector<8x1xf32>
      %295 = arith.addf %291, %294 : vector<8x1xf32>
      %296 = math.rsqrt %295 : vector<8x1xf32>
      %297 = vector.broadcast %296 : vector<8x1xf32> to vector<8x32xf32>
      %298 = arith.mulf %293, %297 : vector<8x32xf32>
      %299 = vector.broadcast %279 : vector<1x32xf32> to vector<8x32xf32>
      %300 = arith.mulf %298, %299 : vector<8x32xf32>
      %301 = vector.broadcast %280 : vector<1x32xf32> to vector<8x32xf32>
      %302 = arith.addf %300, %301 : vector<8x32xf32>
      %c0_99 = arith.constant 0 : index
      %c0_100 = arith.constant 0 : index
      %303 = vector.load %arg10[%c0_99, %c0_100] : memref<8x32xf32, #tpu.memory_space<vmem>>, vector<8x32xf32>
      tpu.vector_store %arg10[%c0_99, %c0_100], %302 {strides = array<i32>} : memref<8x32xf32, #tpu.memory_space<vmem>>, vector<8x32xf32>,
    } else {
    }
    return
  }
  func.func @transform_0(%arg0: i32, %arg1: i32) -> (i32, i32) {
    %c0_i32 = arith.constant 0 : i32
    %c0_i32_0 = arith.constant 0 : i32
    return %arg0, %c0_i32 : i32, i32
  }
  func.func @transform_1(%arg0: i32, %arg1: i32) -> (i32, i32, i32) {
    %c0_i32 = arith.constant 0 : i32
    %c0_i32_0 = arith.constant 0 : i32
    %c0_i32_1 = arith.constant 0 : i32
    return %arg1, %c0_i32, %c0_i32_0 : i32, i32, i32
  }
  func.func @transform_2(%arg0: i32, %arg1: i32) -> (i32, i32, i32) {
    %c0_i32 = arith.constant 0 : i32
    %c0_i32_0 = arith.constant 0 : i32
    %c0_i32_1 = arith.constant 0 : i32
    return %arg1, %c0_i32, %c0_i32_0 : i32, i32, i32
  }
  func.func @transform_3(%arg0: i32, %arg1: i32) -> (i32, i32, i32) {
    %c0_i32 = arith.constant 0 : i32
    %c0_i32_0 = arith.constant 0 : i32
    %c0_i32_1 = arith.constant 0 : i32
    return %arg1, %c0_i32, %c0_i32_0 : i32, i32, i32
  }
  func.func @transform_4(%arg0: i32, %arg1: i32) -> (i32, i32, i32) {
    %c0_i32 = arith.constant 0 : i32
    %c0_i32_0 = arith.constant 0 : i32
    %c0_i32_1 = arith.constant 0 : i32
    return %arg1, %c0_i32, %c0_i32_0 : i32, i32, i32
  }
  func.func @transform_5(%arg0: i32, %arg1: i32) -> (i32, i32, i32) {
    %c0_i32 = arith.constant 0 : i32
    %c0_i32_0 = arith.constant 0 : i32
    %c0_i32_1 = arith.constant 0 : i32
    return %arg1, %c0_i32, %c0_i32_0 : i32, i32, i32
  }
  func.func @transform_6(%arg0: i32, %arg1: i32) -> (i32, i32) {
    %c0_i32 = arith.constant 0 : i32
    %c0_i32_0 = arith.constant 0 : i32
    %c0_i32_1 = arith.constant 0 : i32
    return %c0_i32, %c0_i32_0 : i32, i32
  }
  func.func @transform_7(%arg0: i32, %arg1: i32) -> (i32, i32) {
    %c0_i32 = arith.constant 0 : i32
    %c0_i32_0 = arith.constant 0 : i32
    %c0_i32_1 = arith.constant 0 : i32
    return %c0_i32, %c0_i32_0 : i32, i32
  }
  func.func @transform_8(%arg0: i32, %arg1: i32) -> (i32, i32) {
    %c0_i32 = arith.constant 0 : i32
    %c0_i32_0 = arith.constant 0 : i32
    return %arg0, %c0_i32 : i32, i32
  }
}

</mosaic_0001>

<llo_original>
// kernel: tpu_custom_call.1
$region0: #{tpu_custom_call.1}
  #allocation0 [shape = 'u32[]', space=smem, size = 0x4, offset = 0x4, fixed_abs, tag = 'smem constant byte address 0x4 - core index']
  #allocation1 [shape = 'u32[144,128]{1,0:T(1,128)}', space=vmem, size = 0x12000, scoped, tag = 'internal scratch']
  #allocation2 [shape = 'bf16[8,32]{1,0:T(8,128)(2,1)}', space=vmem, size = 0x800, scoped, tag = 'scratch operand']
  %s0 = inlined_call_operand.hbm [shape: f32[16,32], index: 0, kind: input, shape index: {}]
  %s1 = inlined_call_operand.hbm [shape: bf16[2,32,96], index: 1, kind: input, shape index: {}]
  %s2 = inlined_call_operand.hbm [shape: bf16[2,32,32], index: 2, kind: input, shape index: {}]
  %s3 = inlined_call_operand.hbm [shape: bf16[2,32,32], index: 3, kind: input, shape index: {}]
  %s4 = inlined_call_operand.hbm [shape: bf16[2,32,32], index: 4, kind: input, shape index: {}]
  %s5 = inlined_call_operand.vmem [shape: f32[2,8,96], index: 5, kind: input, shape index: {}]
  %s6 = inlined_call_operand.vmem [shape: f32[1,32], index: 6, kind: input, shape index: {}]
  %s7 = inlined_call_operand.vmem [shape: f32[1,32], index: 7, kind: input, shape index: {}]
  %s8 = inlined_call_operand.hbm [shape: f32[16,32], index: 8, kind: output, shape index: {}]
  %s9 = sld [smem:[#allocation0]]
  $region97: #{tpu_custom_call.1} parent=0
    _
  %s11 = ssub.s32 1, %s9
  %s12 = scalar_select 0, %s11, %s9
  $region1: #{tpu_custom_call.1} parent=0
    #allocation3 [shape = 'u8[8192]{0}', space=vmem, size = 0x2000, scoped, tag = 'input window, operand 0']
    #allocation4 [shape = 's32[2]{0}', space=sflag, size = 0x8, scoped, tag = 'scoped memory for tpu_custom_call.1']
    #allocation5 [shape = 's32[2]{0}', space=sflag, size = 0x8, scoped, tag = 'scoped memory for tpu_custom_call.1']
    #allocation6 [shape = 'u8[16384]{0}', space=vmem, size = 0x4000, scoped, tag = 'input window, operand 1']
    #allocation7 [shape = 's32[2]{0}', space=sflag, size = 0x8, scoped, tag = 'scoped memory for tpu_custom_call.1']
    #allocation8 [shape = 'u8[16384]{0}', space=vmem, size = 0x4000, scoped, tag = 'input window, operand 2']
    #allocation9 [shape = 'u8[16384]{0}', space=vmem, size = 0x4000, scoped, tag = 'input window, operand 3']
    #allocation10 [shape = 's32[2]{0}', space=sflag, size = 0x8, scoped, tag = 'scoped memory for tpu_custom_call.1']
    #allocation11 [shape = 'u8[16384]{0}', space=vmem, size = 0x4000, scoped, tag = 'input window, operand 4']
    #allocation12 [shape = 'u8[8192]{0}', space=vmem, size = 0x2000, scoped, tag = 'output window, operand 0']
    %13 = vsyncpa [#allocation4], 0
    %s14 = scalar_lea.sflag [#allocation4], 1
    %15 = vsyncpa %s14, 0
    %16 = vsyncpa [#allocation7], 0
    %s17 = scalar_lea.sflag [#allocation7], 1
    %18 = vsyncpa %s17, 0
    %19 = vsyncpa [#allocation10], 0
    %s20 = scalar_lea.sflag [#allocation10], 1
    %21 = vsyncpa %s20, 0
    %22 = vsyncpa [#allocation5], 0
    %s23 = scalar_lea.sflag [#allocation5], 1
    %24 = vsyncpa %s23, 0
    loop: start=0, step=1, limit=6
    $region2: #{tpu_custom_call.1} parent=1 // loop_pre_header
      _
    $region3: #{tpu_custom_call.1} parent=1 // loop_header
      %s26 = sphi 0, %s30
      %p27 = scmp.ge.s32.totalorder %s26, 6
      %s33 = sphi 0, %s45
      %s34 = sphi 0, %s41
      %s35 = sphi 0, %s33
      %s36 = sphi 0, %s34
      %s37 = sphi 0, %s35
      %s38 = sphi 0, %s36
      %s48 = sphi 0, %s50
      %s51 = sphi 0, %s48
      %s52 = sphi 0, %s51
      %s68 = sphi 0, %s52
      %s74 = sphi 0, %s76
      %s77 = sphi 0, %s74
      %s78 = sphi 0, %s77
      %s94 = sphi 0, %s78
      %s100 = sphi 0, %s102
      %s103 = sphi 0, %s100
      %s104 = sphi 0, %s103
      %s120 = sphi 0, %s104
      %s126 = sphi 0, %s128
      %s129 = sphi 0, %s126
      %s130 = sphi 0, %s129
      %s146 = sphi 0, %s130
      %s152 = sphi 0, %s154
      %s155 = sphi 0, %s152
      %s156 = sphi 0, %s155
      %s172 = sphi 0, %s156
      %s178 = sphi 0, %s180
      %s181 = sphi 0, %s178
      %s182 = sphi 0, %s181
      %s198 = sphi 0, %s182
      %s202 = sphi 0, %s202
      %s204 = sphi 0, %s202
      %s205 = sphi 0, %s204
      %s219 = sphi 0, %s205
      %s223 = sphi 0, %s223
      %s225 = sphi 0, %s223
      %s226 = sphi 0, %s225
      %s240 = sphi 0, %s226
      %s246 = sphi 0, %s248
      %s249 = sphi 0, %s246
      %s250 = sphi 0, %s249
      %s266 = sphi 0, %s250
    $region4: #{tpu_custom_call.1} parent=1 // loop_header_branch
      %29 = sbr.rel (%p27) target = $region8
    $region5: #{tpu_custom_call.1} parent=1 // loop_body
      %s31 = ssub.s32 %s26, 1
      %s32 = ssub.s32 %s26, 2
      %s39 = sadd.s32 1, %s34
      %p40 = scmp.ge.s32.totalorder %s39, 2
      %s41 = scalar_select %p40, 0, %s39
      %s42 = sadd.s32 1, %s33
      %s43 = scalar_select %p40, %s42, %s33
      %p44 = scmp.ge.s32.totalorder %s43, 2
      %s45 = scalar_select %p44, 0, %s43
      %s46 = ssub.s32 %s33, %s45
      %p47 = scmp.eq.s32.totalorder %s46, 0
      %s49 = sadd.s32 %s48, 1
      %s50 = scalar_select %p47, %s48, %s49
      %p53 = pneg %p47
      %p54 = scmp.eq.s32.totalorder %s26, 3
      %p55 = por %p53, %p54
      %p56 = scmp.ne.s32.totalorder %s48, %s51
      %p57 = scmp.eq.s32.totalorder %s26, 0
      %p58 = por %p56, %p57
      %p59 = scmp.ne.s32.totalorder %s48, %s51
      %p60 = scmp.eq.s32.totalorder %s31, 3
      %p61 = por %p59, %p60
      %p62 = scmp.ne.s32.totalorder %s51, %s52
      %p63 = scmp.eq.s32.totalorder %s31, 0
      %p64 = por %p62, %p63
      %p65 = scmp.ne.s32.totalorder %s51, %s52
      %p66 = scmp.eq.s32.totalorder %s32, 3
      %p67 = por %p65, %p66
      %p69 = scmp.ne.s32.totalorder %s52, %s68
      %p70 = scmp.eq.s32.totalorder %s32, 0
      %p71 = por %p69, %p70
      %s72 = ssub.s32 %s34, %s41
      %p73 = scmp.eq.s32.totalorder %s72, 0
      %s75 = sadd.s32 %s74, 1
      %s76 = scalar_select %p73, %s74, %s75
      %p79 = pneg %p73
      %p80 = scmp.eq.s32.totalorder %s26, 3
      %p81 = por %p79, %p80
      %p82 = scmp.ne.s32.totalorder %s74, %s77
      %p83 = scmp.eq.s32.totalorder %s26, 0
      %p84 = por %p82, %p83
      %p85 = scmp.ne.s32.totalorder %s74, %s77
      %p86 = scmp.eq.s32.totalorder %s31, 3
      %p87 = por %p85, %p86
      %p88 = scmp.ne.s32.totalorder %s77, %s78
      %p89 = scmp.eq.s32.totalorder %s31, 0
      %p90 = por %p88, %p89
      %p91 = scmp.ne.s32.totalorder %s77, %s78
      %p92 = scmp.eq.s32.totalorder %s32, 3
      %p93 = por %p91, %p92
      %p95 = scmp.ne.s32.totalorder %s78, %s94
      %p96 = scmp.eq.s32.totalorder %s32, 0
      %p97 = por %p95, %p96
      %s98 = ssub.s32 %s34, %s41
      %p99 = scmp.eq.s32.totalorder %s98, 0
      %s101 = sadd.s32 %s100, 1
      %s102 = scalar_select %p99, %s100, %s101
      %p105 = pneg %p99
      %p106 = scmp.eq.s32.totalorder %s26, 3
      %p107 = por %p105, %p106
      %p108 = scmp.ne.s32.totalorder %s100, %s103
      %p109 = scmp.eq.s32.totalorder %s26, 0
      %p110 = por %p108, %p109
      %p111 = scmp.ne.s32.totalorder %s100, %s103
      %p112 = scmp.eq.s32.totalorder %s31, 3
      %p113 = por %p111, %p112
      %p114 = scmp.ne.s32.totalorder %s103, %s104
      %p115 = scmp.eq.s32.totalorder %s31, 0
      %p116 = por %p114, %p115
      %p117 = scmp.ne.s32.totalorder %s103, %s104
      %p118 = scmp.eq.s32.totalorder %s32, 3
      %p119 = por %p117, %p118
      %p121 = scmp.ne.s32.totalorder %s104, %s120
      %p122 = scmp.eq.s32.totalorder %s32, 0
      %p123 = por %p121, %p122
      %s124 = ssub.s32 %s34, %s41
      %p125 = scmp.eq.s32.totalorder %s124, 0
      %s127 = sadd.s32 %s126, 1
      %s128 = scalar_select %p125, %s126, %s127
      %p131 = pneg %p125
      %p132 = scmp.eq.s32.totalorder %s26, 3
      %p133 = por %p131, %p132
      %p134 = scmp.ne.s32.totalorder %s126, %s129
      %p135 = scmp.eq.s32.totalorder %s26, 0
      %p136 = por %p134, %p135
      %p137 = scmp.ne.s32.totalorder %s126, %s129
      %p138 = scmp.eq.s32.totalorder %s31, 3
      %p139 = por %p137, %p138
      %p140 = scmp.ne.s32.totalorder %s129, %s130
      %p141 = scmp.eq.s32.totalorder %s31, 0
      %p142 = por %p140, %p141
      %p143 = scmp.ne.s32.totalorder %s129, %s130
      %p144 = scmp.eq.s32.totalorder %s32, 3
      %p145 = por %p143, %p144
      %p147 = scmp.ne.s32.totalorder %s130, %s146
      %p148 = scmp.eq.s32.totalorder %s32, 0
      %p149 = por %p147, %p148
      %s150 = ssub.s32 %s34, %s41
      %p151 = scmp.eq.s32.totalorder %s150, 0
      %s153 = sadd.s32 %s152, 1
      %s154 = scalar_select %p151, %s152, %s153
      %p157 = pneg %p151
      %p158 = scmp.eq.s32.totalorder %s26, 3
      %p159 = por %p157, %p158
      %p160 = scmp.ne.s32.totalorder %s152, %s155
      %p161 = scmp.eq.s32.totalorder %s26, 0
      %p162 = por %p160, %p161
      %p163 = scmp.ne.s32.totalorder %s152, %s155
      %p164 = scmp.eq.s32.totalorder %s31, 3
      %p165 = por %p163, %p164
      %p166 = scmp.ne.s32.totalorder %s155, %s156
      %p167 = scmp.eq.s32.totalorder %s31, 0
      %p168 = por %p166, %p167
      %p169 = scmp.ne.s32.totalorder %s155, %s156
      %p170 = scmp.eq.s32.totalorder %s32, 3
      %p171 = por %p169, %p170
      %p173 = scmp.ne.s32.totalorder %s156, %s172
      %p174 = scmp.eq.s32.totalorder %s32, 0
      %p175 = por %p173, %p174
      %s176 = ssub.s32 %s34, %s41
      %p177 = scmp.eq.s32.totalorder %s176, 0
      %s179 = sadd.s32 %s178, 1
      %s180 = scalar_select %p177, %s178, %s179
      %p183 = pneg %p177
      %p184 = scmp.eq.s32.totalorder %s26, 3
      %p185 = por %p183, %p184
      %p186 = scmp.ne.s32.totalorder %s178, %s181
      %p187 = scmp.eq.s32.totalorder %s26, 0
      %p188 = por %p186, %p187
      %p189 = scmp.ne.s32.totalorder %s178, %s181
      %p190 = scmp.eq.s32.totalorder %s31, 3
      %p191 = por %p189, %p190
      %p192 = scmp.ne.s32.totalorder %s181, %s182
      %p193 = scmp.eq.s32.totalorder %s31, 0
      %p194 = por %p192, %p193
      %p195 = scmp.ne.s32.totalorder %s181, %s182
      %p196 = scmp.eq.s32.totalorder %s32, 3
      %p197 = por %p195, %p196
      %p199 = scmp.ne.s32.totalorder %s182, %s198
      %p200 = scmp.eq.s32.totalorder %s32, 0
      %p201 = por %p199, %p200
      %s203 = sadd.s32 %s202, 1
      %p206 = scmp.eq.s32.totalorder %s26, 3
      %p207 = scmp.ne.s32.totalorder %s202, %s204
      %p208 = scmp.eq.s32.totalorder %s26, 0
      %p209 = por %p207, %p208
      %p210 = scmp.ne.s32.totalorder %s202, %s204
      %p211 = scmp.eq.s32.totalorder %s31, 3
      %p212 = por %p210, %p211
      %p213 = scmp.ne.s32.totalorder %s204, %s205
      %p214 = scmp.eq.s32.totalorder %s31, 0
      %p215 = por %p213, %p214
      %p216 = scmp.ne.s32.totalorder %s204, %s205
      %p217 = scmp.eq.s32.totalorder %s32, 3
      %p218 = por %p216, %p217
      %p220 = scmp.ne.s32.totalorder %s205, %s219
      %p221 = scmp.eq.s32.totalorder %s32, 0
      %p222 = por %p220, %p221
      %s224 = sadd.s32 %s223, 1
      %p227 = scmp.eq.s32.totalorder %s26, 3
      %p228 = scmp.ne.s32.totalorder %s223, %s225
      %p229 = scmp.eq.s32.totalorder %s26, 0
      %p230 = por %p228, %p229
      %p231 = scmp.ne.s32.totalorder %s223, %s225
      %p232 = scmp.eq.s32.totalorder %s31, 3
      %p233 = por %p231, %p232
      %p234 = scmp.ne.s32.totalorder %s225, %s226
      %p235 = scmp.eq.s32.totalorder %s31, 0
      %p236 = por %p234, %p235
      %p237 = scmp.ne.s32.totalorder %s225, %s226
      %p238 = scmp.eq.s32.totalorder %s32, 3
      %p239 = por %p237, %p238
      %p241 = scmp.ne.s32.totalorder %s226, %s240
      %p242 = scmp.eq.s32.totalorder %s32, 0
      %p243 = por %p241, %p242
      %s244 = ssub.s32 %s33, %s45
      %p245 = scmp.eq.s32.totalorder %s244, 0
      %s247 = sadd.s32 %s246, 1
      %s248 = scalar_select %p245, %s246, %s247
      %p251 = pneg %p245
      %p252 = scmp.eq.s32.totalorder %s26, 3
      %p253 = por %p251, %p252
      %p254 = scmp.ne.s32.totalorder %s246, %s249
      %p255 = scmp.eq.s32.totalorder %s26, 0
      %p256 = por %p254, %p255
      %p257 = scmp.ne.s32.totalorder %s246, %s249
      %p258 = scmp.eq.s32.totalorder %s31, 3
      %p259 = por %p257, %p258
      %p260 = scmp.ne.s32.totalorder %s249, %s250
      %p261 = scmp.eq.s32.totalorder %s31, 0
      %p262 = por %p260, %p261
      %p263 = scmp.ne.s32.totalorder %s249, %s250
      %p264 = scmp.eq.s32.totalorder %s32, 3
      %p265 = por %p263, %p264
      %p267 = scmp.ne.s32.totalorder %s250, %s266
      %p268 = scmp.eq.s32.totalorder %s32, 0
      %p269 = por %p267, %p268
      %p270 = scmp.le.s32.totalorder 1, %s26
      %p271 = scmp.lt.s32.totalorder %s26, 5
      %p272 = pnand %p270, %p271
      %p273 = pneg %p272
      // Predicated region
      $region9: #{tpu_custom_call.1} parent=5 // pred_check
        _
      $region10: #{tpu_custom_call.1} parent=5 // pred_check_branch
        %275 = sbr.rel (%p272) target = $region12
      $region11: #{tpu_custom_call.1} parent=5 // pred_region
        %s276 = ssub.s32 %s26, 1
        // Predicated region
        $region13: #{tpu_custom_call.1} parent=11 // pred_check
          %p277 = pneg %p215
        $region14: #{tpu_custom_call.1} parent=11 // pred_check_branch
          %279 = sbr.rel (%p277) target = $region16
        $region15: #{tpu_custom_call.1} parent=11 // pred_region
          _
        $region16: #{tpu_custom_call.1} parent=11 // pred_fallthru
          _
        // Predicated region
        $region17: #{tpu_custom_call.1} parent=11 // pred_check
          %p280 = pneg %p236
        $region18: #{tpu_custom_call.1} parent=11 // pred_check_branch
          %282 = sbr.rel (%p280) target = $region20
        $region19: #{tpu_custom_call.1} parent=11 // pred_region
          _
        $region20: #{tpu_custom_call.1} parent=11 // pred_fallthru
          _
      $region12: #{tpu_custom_call.1} parent=5 // pred_fallthru
        _
      %p283 = scmp.lt.s32.totalorder %s26, 4
      // Predicated region
      $region21: #{tpu_custom_call.1} parent=5 // pred_check
        %p284 = pneg %p283
      $region22: #{tpu_custom_call.1} parent=5 // pred_check_branch
        %286 = sbr.rel (%p284) target = $region24
      $region23: #{tpu_custom_call.1} parent=5 // pred_region
        // Predicated region
        $region25: #{tpu_custom_call.1} parent=23 // pred_check
          %p287 = pneg %p58
        $region26: #{tpu_custom_call.1} parent=23 // pred_check_branch
          %289 = sbr.rel (%p287) target = $region28
        $region27: #{tpu_custom_call.1} parent=23 // pred_region
          %s290 = sand.u32 %s48, 1
          %s291 = scalar_lea.sflag [#allocation4], %s290
          %s292 = sand.u32 %s48, 1
          %s293 = smul.addr %s292, 8
          %s294 = scalar_lea.vmem [#allocation3], %s293
          %s296 = ssub.s32 128, 128
          %297 = vsyncadd %s291, %s296
          %s298 = smul.addr %s33, 128
          %s299 = scalar_lea.hbm %s0, %s298
          %s301 = sshll.u32 %s294, 4
          %s302 = int_to_ptr.vmem [resolvable:$true] %s301
          %304 = dma.hbm_to_vmem [thread:$0]  %s299, 128, %s302, %s291
        $region28: #{tpu_custom_call.1} parent=23 // pred_fallthru
          _
        // Predicated region
        $region29: #{tpu_custom_call.1} parent=23 // pred_check
          %p305 = pneg %p84
        $region30: #{tpu_custom_call.1} parent=23 // pred_check_branch
          %307 = sbr.rel (%p305) target = $region32
        $region31: #{tpu_custom_call.1} parent=23 // pred_region
          %s308 = sand.u32 %s26, 1
          %s309 = scalar_lea.sflag [#allocation7], %s308
          %s310 = sand.u32 %s74, 1
          %s311 = smul.addr %s310, 16
          %s312 = scalar_lea.vmem [#allocation6], %s311
          %s314 = ssub.s32 256, 256
          %315 = vsyncadd %s309, %s314
          %s316 = smul.addr %s34, 4
          %s317 = smul.addr %s316, 64
          %s318 = scalar_lea.hbm %s1, %s317
          %s319 = sshll.u32 %s312, 4
          %s320 = int_to_ptr.vmem [resolvable:$true] %s319
          %325 = dma.hbm_to_vmem [thread:$0]  %s318, 256, %s320, %s309, 64, 64, 4
        $region32: #{tpu_custom_call.1} parent=23 // pred_fallthru
          _
        // Predicated region
        $region33: #{tpu_custom_call.1} parent=23 // pred_check
          %p326 = pneg %p110
        $region34: #{tpu_custom_call.1} parent=23 // pred_check_branch
          %328 = sbr.rel (%p326) target = $region36
        $region35: #{tpu_custom_call.1} parent=23 // pred_region
          %s329 = sand.u32 %s26, 1
          %s330 = scalar_lea.sflag [#allocation7], %s329
          %s331 = sand.u32 %s100, 1
          %s332 = smul.addr %s331, 16
          %s333 = scalar_lea.vmem [#allocation8], %s332
          %s335 = ssub.s32 256, 256
          %336 = vsyncadd %s330, %s335
          %s337 = smul.addr %s34, 4
          %s338 = smul.addr %s337, 64
          %s339 = scalar_lea.hbm %s2, %s338
          %s340 = sshll.u32 %s333, 4
          %s341 = int_to_ptr.vmem [resolvable:$true] %s340
          %346 = dma.hbm_to_vmem [thread:$0]  %s339, 256, %s341, %s330, 64, 64, 4
        $region36: #{tpu_custom_call.1} parent=23 // pred_fallthru
          _
        // Predicated region
        $region37: #{tpu_custom_call.1} parent=23 // pred_check
          %p347 = pneg %p136
        $region38: #{tpu_custom_call.1} parent=23 // pred_check_branch
          %349 = sbr.rel (%p347) target = $region40
        $region39: #{tpu_custom_call.1} parent=23 // pred_region
          %s350 = sand.u32 %s26, 1
          %s351 = scalar_lea.sflag [#allocation10], %s350
          %s352 = sand.u32 %s126, 1
          %s353 = smul.addr %s352, 16
          %s354 = scalar_lea.vmem [#allocation9], %s353
          %s356 = ssub.s32 256, 256
          %357 = vsyncadd %s351, %s356
          %s358 = smul.addr %s34, 4
          %s359 = smul.addr %s358, 64
          %s360 = scalar_lea.hbm %s3, %s359
          %s361 = sshll.u32 %s354, 4
          %s362 = int_to_ptr.vmem [resolvable:$true] %s361
          %367 = dma.hbm_to_vmem [thread:$0]  %s360, 256, %s362, %s351, 64, 64, 4
        $region40: #{tpu_custom_call.1} parent=23 // pred_fallthru
          _
        // Predicated region
        $region41: #{tpu_custom_call.1} parent=23 // pred_check
          %p368 = pneg %p162
        $region42: #{tpu_custom_call.1} parent=23 // pred_check_branch
          %370 = sbr.rel (%p368) target = $region44
        $region43: #{tpu_custom_call.1} parent=23 // pred_region
          %s371 = sand.u32 %s26, 1
          %s372 = scalar_lea.sflag [#allocation10], %s371
          %s373 = sand.u32 %s152, 1
          %s374 = smul.addr %s373, 16
          %s375 = scalar_lea.vmem [#allocation11], %s374
          %s377 = ssub.s32 256, 256
          %378 = vsyncadd %s372, %s377
          %s379 = smul.addr %s34, 4
          %s380 = smul.addr %s379, 64
          %s381 = scalar_lea.hbm %s4, %s380
          %s382 = sshll.u32 %s375, 4
          %s383 = int_to_ptr.vmem [resolvable:$true] %s382
          %388 = dma.hbm_to_vmem [thread:$0]  %s381, 256, %s383, %s372, 64, 64, 4
        $region44: #{tpu_custom_call.1} parent=23 // pred_fallthru
          _
        // Predicated region
        $region45: #{tpu_custom_call.1} parent=23 // pred_check
          %p389 = pneg %p188
        $region46: #{tpu_custom_call.1} parent=23 // pred_check_branch
          %391 = sbr.rel (%p389) target = $region48
        $region47: #{tpu_custom_call.1} parent=23 // pred_region
          %p392 = scmp.lt.s32.totalorder %s34, 1
          %s393 = scalar_select %p392, %s34, 1
          %s394 = smul.addr %s393, 8
          %s395 = scalar_lea.vmem %s5, %s394
        $region48: #{tpu_custom_call.1} parent=23 // pred_fallthru
          _
      $region24: #{tpu_custom_call.1} parent=5 // pred_fallthru
        _
      %p396 = scmp.le.s32.totalorder 1, %s26
      %p397 = scmp.lt.s32.totalorder %s26, 5
      %p398 = pnand %p396, %p397
      %p399 = pneg %p398
      // Predicated region
      $region49: #{tpu_custom_call.1} parent=5 // pred_check
        _
      $region50: #{tpu_custom_call.1} parent=5 // pred_check_branch
        %401 = sbr.rel (%p398) target = $region52
      $region51: #{tpu_custom_call.1} parent=5 // pred_region
        %s402 = ssub.s32 %s26, 1
        %s403 = sand.u32 %s51, 1
        %s404 = scalar_lea.sflag [#allocation4], %s403
        %s405 = sand.u32 %s51, 1
        %s406 = smul.addr %s405, 8
        %s407 = scalar_lea.vmem [#allocation3], %s406
        // Predicated region
        $region53: #{tpu_custom_call.1} parent=51 // pred_check
          %p408 = pneg %p64
        $region54: #{tpu_custom_call.1} parent=51 // pred_check_branch
          %410 = sbr.rel (%p408) target = $region56
        $region55: #{tpu_custom_call.1} parent=51 // pred_region
          %411 = dma.done %s404, 128
        $region56: #{tpu_custom_call.1} parent=51 // pred_fallthru
          _
        %s412 = sand.u32 %s31, 1
        %s413 = scalar_lea.sflag [#allocation7], %s412
        %s414 = sand.u32 %s77, 1
        %s415 = smul.addr %s414, 16
        %s416 = scalar_lea.vmem [#allocation6], %s415
        // Predicated region
        $region57: #{tpu_custom_call.1} parent=51 // pred_check
          %p417 = pneg %p90
        $region58: #{tpu_custom_call.1} parent=51 // pred_check_branch
          %419 = sbr.rel (%p417) target = $region60
        $region59: #{tpu_custom_call.1} parent=51 // pred_region
          %420 = dma.done %s413, 256
        $region60: #{tpu_custom_call.1} parent=51 // pred_fallthru
          _
        %s421 = sand.u32 %s31, 1
        %s422 = scalar_lea.sflag [#allocation7], %s421
        %s423 = sand.u32 %s103, 1
        %s424 = smul.addr %s423, 16
        %s425 = scalar_lea.vmem [#allocation8], %s424
        // Predicated region
        $region61: #{tpu_custom_call.1} parent=51 // pred_check
          %p426 = pneg %p116
        $region62: #{tpu_custom_call.1} parent=51 // pred_check_branch
          %428 = sbr.rel (%p426) target = $region64
        $region63: #{tpu_custom_call.1} parent=51 // pred_region
          %429 = dma.done %s422, 256
        $region64: #{tpu_custom_call.1} parent=51 // pred_fallthru
          _
        %s430 = sand.u32 %s31, 1
        %s431 = scalar_lea.sflag [#allocation10], %s430
        %s432 = sand.u32 %s129, 1
        %s433 = smul.addr %s432, 16
        %s434 = scalar_lea.vmem [#allocation9], %s433
        // Predicated region
        $region65: #{tpu_custom_call.1} parent=51 // pred_check
          %p435 = pneg %p142
        $region66: #{tpu_custom_call.1} parent=51 // pred_check_branch
          %437 = sbr.rel (%p435) target = $region68
        $region67: #{tpu_custom_call.1} parent=51 // pred_region
          %438 = dma.done %s431, 256
        $region68: #{tpu_custom_call.1} parent=51 // pred_fallthru
          _
        %s439 = sand.u32 %s31, 1
        %s440 = scalar_lea.sflag [#allocation10], %s439
        %s441 = sand.u32 %s155, 1
        %s442 = smul.addr %s441, 16
        %s443 = scalar_lea.vmem [#allocation11], %s442
        // Predicated region
        $region69: #{tpu_custom_call.1} parent=51 // pred_check
          %p444 = pneg %p168
        $region70: #{tpu_custom_call.1} parent=51 // pred_check_branch
          %446 = sbr.rel (%p444) target = $region72
        $region71: #{tpu_custom_call.1} parent=51 // pred_region
          %447 = dma.done %s440, 256
        $region72: #{tpu_custom_call.1} parent=51 // pred_fallthru
          _
        %s448 = sand.u32 %s51, 1
        %s449 = scalar_lea.sflag [#allocation4], %s448
        %s450 = sand.u32 %s51, 1
        %s451 = smul.addr %s450, 8
        %s452 = scalar_lea.vmem [#allocation3], %s451
        %p453 = pneg %p64
        %p454 = pneg %p61
        %s455 = sand.u32 %s31, 1
        %s456 = scalar_lea.sflag [#allocation7], %s455
        %s457 = sand.u32 %s77, 1
        %s458 = smul.addr %s457, 16
        %s459 = scalar_lea.vmem [#allocation6], %s458
        %p460 = pneg %p90
        %p461 = pneg %p87
        %s462 = sand.u32 %s31, 1
        %s463 = scalar_lea.sflag [#allocation7], %s462
        %s464 = sand.u32 %s103, 1
        %s465 = smul.addr %s464, 16
        %s466 = scalar_lea.vmem [#allocation8], %s465
        %p467 = pneg %p116
        %p468 = pneg %p113
        %s469 = sand.u32 %s31, 1
        %s470 = scalar_lea.sflag [#allocation10], %s469
        %s471 = sand.u32 %s129, 1
        %s472 = smul.addr %s471, 16
        %s473 = scalar_lea.vmem [#allocation9], %s472
        %p474 = pneg %p142
        %p475 = pneg %p139
        %s476 = sand.u32 %s31, 1
        %s477 = scalar_lea.sflag [#allocation10], %s476
        %s478 = sand.u32 %s155, 1
        %s479 = smul.addr %s478, 16
        %s480 = scalar_lea.vmem [#allocation11], %s479
        %p481 = pneg %p168
        %p482 = pneg %p165
        %p483 = scmp.lt.s32.totalorder %s36, 1
        %s484 = scalar_select %p483, %s36, 1
        %s485 = smul.addr %s484, 8
        %s486 = scalar_lea.vmem %s5, %s485
        %p487 = pneg %p194
        %p488 = pneg %p191
        %p489 = pneg %p215
        %p490 = pneg %p212
        %p491 = pneg %p236
        %p492 = pneg %p233
        %p493 = pneg %p262
        %p494 = pneg %p259
        %s495 = sand.u32 %s249, 1
        %s496 = scalar_lea.sflag [#allocation5], %s495
        %s497 = sand.u32 %s249, 1
        %s498 = smul.addr %s497, 8
        %s499 = scalar_lea.vmem [#allocation12], %s498
        %p500 = scmp.lt.s32.totalorder %s36, 1
        %s501 = scalar_select %p500, %s36, 1
        %s502 = smul.addr %s501, 8
        %s503 = scalar_lea.vmem %s5, %s502
        %p505 = scmp.eq.s32.totalorder %s36, 0
        // Predicated region
        $region73: #{tpu_custom_call.1} parent=51 // pred_check
          %p506 = pneg %p505
        $region74: #{tpu_custom_call.1} parent=51 // pred_check_branch
          %508 = sbr.rel (%p506) target = $region76
        $region75: #{tpu_custom_call.1} parent=51 // pred_region
          %v509 = vld [vmem:[%s407] sm:$0xff]
          %vm510 = vcmask 261120
          %511 = vst.msk [vmem:[%s499] sm:$0xff] %vm510, %v509
        $region76: #{tpu_custom_call.1} parent=51 // pred_fallthru
          _
        %v512 = vld [vmem:[%s499] sm:$0xff]
        %v513 = vpack.c.bf16 %v512, %v512
        %v514 = vld [vmem:[%s503] sm:$0xff]
        %v515 = vld [vmem:[%s416] sm:$0xf]
        %v516 = vld [vmem:[%s416 + $0x4] sm:$0xf]
        %v517 = vld [vmem:[%s416 + $0x8] sm:$0xf]
        %v518 = vld [vmem:[%s416 + $0xc] sm:$0xf]
        %v519 = vlaneseq
        %v520 = vshrl.u32 %v519, 7
        %v521 = vsub.s32 0, %v520
        %v522 = vrot.slane %v514, %v521
        %v527 = vunpack.c.l.b16 %v515
        %v528 = vunpack.c.l.b16 %v516
        %v529 = vunpack.c.l.b16 %v517
        %v530 = vunpack.c.l.b16 %v518
        %v531 = vpack.c.b16 %v528, %v527
        %v532 = vpack.c.b16 %v530, %v529
        %vm535 = vcmask 261120
        %v537 = vsel %vm535, %v513, 0
        %539 = vmatprep.subr.bf16.mxu0 0
        %540 = vmatpush1.bf16.msra.mxu0 %v531
        %541 = vmatprep.subr.bf16.mxu0 0
        %542 = vmatpush1.bf16.msra.mxu0 %v532
        %543 = vmatprep.subr.bf16.mxu0 0
        %544 = vmatpush1.bf16.msra.mxu0 0
        %545 = vmatprep.subr.bf16.mxu0 0
        %546 = vmatpush1.bf16.msra.mxu0 0
        %547 = vmatprep.subr.bf16.mxu0 0
        %548 = vmatpush1.bf16.msra.mxu0 0
        %549 = vmatprep.subr.bf16.mxu0 0
        %550 = vmatpush1.bf16.msra.mxu0 0
        %551 = vmatprep.subr.bf16.mxu0 0
        %552 = vmatpush1.bf16.msra.mxu0 0
        %553 = vmatprep.subr.bf16.mxu0 0
        %554 = vmatpush1.bf16.msra.mxu0 0
        %555 = vmatprep.subr.bf16.mxu0 0
        %556 = vmatpush1.bf16.msra.mxu0 0
        %557 = vmatprep.subr.bf16.mxu0 0
        %558 = vmatpush1.bf16.msra.mxu0 0
        %559 = vmatprep.subr.bf16.mxu0 0
        %560 = vmatpush1.bf16.msra.mxu0 0
        %561 = vmatprep.subr.bf16.mxu0 0
        %562 = vmatpush1.bf16.msra.mxu0 0
        %563 = vmatprep.subr.bf16.mxu0 0
        %564 = vmatpush1.bf16.msra.mxu0 0
        %565 = vmatprep.subr.bf16.mxu0 0
        %566 = vmatpush1.bf16.msra.mxu0 0
        %567 = vmatprep.subr.bf16.mxu0 0
        %568 = vmatpush1.bf16.msra.mxu0 0
        %569 = vmatprep.subr.bf16.mxu0 0
        %570 = vmatpush1.bf16.msra.mxu0 0
        %571 = vmatprep.mubr.bf16.mxu0 0
        %572 = vmatmul.mubr.bf16.gmra.mrb[0].mxu0 %v537
        %v573 = vpop.f32.mrb[0].mxu0
        %v574 = vadd.f32 %v522, %v573
        %v575 = vpop.f32.mrb[0].mxu0
        %v576 = vpop.f32.mrb[0].mxu0
        %v577 = vpop.f32.mrb[0].mxu0
        %578 = vdwg.mxu0
        %v579 = vpack.c.bf16 %v574, %v574
        %581 = vrot.lane.b32.xlu0 %v579, 96
        %v582 = vpop.permute.xlu0 %581
        %vm583 = vcmask 31744
        %v585 = vsel %vm583, %v579, 0
        %v588 = vsel %vm583, %v582, 0
        %590 = vmatprep.subr.bf16.mxu0 0
        %591 = vmatpush1.bf16.xpose.msra.mxu0 %v588
        %592 = vmatprep.subr.bf16.mxu0 0
        %593 = vmatpush1.bf16.xpose.msra.mxu0 0
        %594 = vmatprep.subr.bf16.mxu0 0
        %595 = vmatpush1.bf16.xpose.msra.mxu0 0
        %596 = vmatprep.subr.bf16.mxu0 0
        %597 = vmatpush1.bf16.xpose.msra.mxu0 0
        %598 = vmatprep.subr.bf16.mxu0 0
        %599 = vmatpush1.bf16.xpose.msra.mxu0 0
        %600 = vmatprep.subr.bf16.mxu0 0
        %601 = vmatpush1.bf16.xpose.msra.mxu0 0
        %602 = vmatprep.subr.bf16.mxu0 0
        %603 = vmatpush1.bf16.xpose.msra.mxu0 0
        %604 = vmatprep.subr.bf16.mxu0 0
        %605 = vmatpush1.bf16.xpose.msra.mxu0 0
        %606 = vmatprep.subr.bf16.mxu0 0
        %607 = vmatpush1.bf16.xpose.msra.mxu0 0
        %608 = vmatprep.subr.bf16.mxu0 0
        %609 = vmatpush1.bf16.xpose.msra.mxu0 0
        %610 = vmatprep.subr.bf16.mxu0 0
        %611 = vmatpush1.bf16.xpose.msra.mxu0 0
        %612 = vmatprep.subr.bf16.mxu0 0
        %613 = vmatpush1.bf16.xpose.msra.mxu0 0
        %614 = vmatprep.subr.bf16.mxu0 0
        %615 = vmatpush1.bf16.xpose.msra.mxu0 0
        %616 = vmatprep.subr.bf16.mxu0 0
        %617 = vmatpush1.bf16.xpose.msra.mxu0 0
        %618 = vmatprep.subr.bf16.mxu0 0
        %619 = vmatpush1.bf16.xpose.msra.mxu0 0
        %620 = vmatprep.subr.bf16.mxu0 0
        %621 = vmatpush1.bf16.xpose.msra.mxu0 0
        %622 = vmatprep.mubr.bf16.mxu0 0
        %623 = vmatmul.mubr.bf16.gmra.mrb[0].mxu0 %v585
        %v624 = vpop.f32.mrb[0].mxu0
        %v625 = vadd.f32 0.0, %v624
        %v626 = vpop.f32.mrb[0].mxu0
        %v627 = vpop.f32.mrb[0].mxu0
        %v628 = vpop.f32.mrb[0].mxu0
        %629 = vdwg.mxu0
        %vm630 = vcmask 64512
        %v631 = vsel %vm630, %v625, -inf
        %632 = vmax.xlane.f32.xlu0 %v631
        %v633 = vpop.xlane.xlu0 %632
        %v634 = vsub.f32 %v625, %v633
        %v635 = vmul.f32 %v634, 1.442695
        %v636 = vpow.pop %v635
        %v637 = vsel %vm630, %v636, 0.0
        %638 = vadd.xlane.f32.xlu0 %v637
        %v639 = vpop.xlane.xlu0 %638
        %v640 = vrcp.pop %v639
        %v641 = vmul.f32 %v636, %v640
        %v642 = vpack.c.bf16 %v641, %v641
        %643 = vrot.lane.b32.xlu0 %v579, 64
        %v644 = vpop.permute.xlu0 %643
        %v646 = vsel %vm630, %v642, 0
        %vm648 = vcmask 1043456
        %v650 = vsel %vm648, %v644, 0
        %652 = vmatprep.subr.bf16.mxu0 0
        %653 = vmatpush1.bf16.msra.mxu0 %v650
        %654 = vmatprep.subr.bf16.mxu0 0
        %655 = vmatpush1.bf16.msra.mxu0 0
        %656 = vmatprep.subr.bf16.mxu0 0
        %657 = vmatpush1.bf16.msra.mxu0 0
        %658 = vmatprep.subr.bf16.mxu0 0
        %659 = vmatpush1.bf16.msra.mxu0 0
        %660 = vmatprep.subr.bf16.mxu0 0
        %661 = vmatpush1.bf16.msra.mxu0 0
        %662 = vmatprep.subr.bf16.mxu0 0
        %663 = vmatpush1.bf16.msra.mxu0 0
        %664 = vmatprep.subr.bf16.mxu0 0
        %665 = vmatpush1.bf16.msra.mxu0 0
        %666 = vmatprep.subr.bf16.mxu0 0
        %667 = vmatpush1.bf16.msra.mxu0 0
        %668 = vmatprep.subr.bf16.mxu0 0
        %669 = vmatpush1.bf16.msra.mxu0 0
        %670 = vmatprep.subr.bf16.mxu0 0
        %671 = vmatpush1.bf16.msra.mxu0 0
        %672 = vmatprep.subr.bf16.mxu0 0
        %673 = vmatpush1.bf16.msra.mxu0 0
        %674 = vmatprep.subr.bf16.mxu0 0
        %675 = vmatpush1.bf16.msra.mxu0 0
        %676 = vmatprep.subr.bf16.mxu0 0
        %677 = vmatpush1.bf16.msra.mxu0 0
        %678 = vmatprep.subr.bf16.mxu0 0
        %679 = vmatpush1.bf16.msra.mxu0 0
        %680 = vmatprep.subr.bf16.mxu0 0
        %681 = vmatpush1.bf16.msra.mxu0 0
        %682 = vmatprep.subr.bf16.mxu0 0
        %683 = vmatpush1.bf16.msra.mxu0 0
        %684 = vmatprep.mubr.bf16.mxu0 0
        %685 = vmatmul.mubr.bf16.gmra.mrb[0].mxu0 %v646
        %v686 = vpop.f32.mrb[0].mxu0
        %v687 = vadd.f32 0.0, %v686
        %v688 = vpop.f32.mrb[0].mxu0
        %v689 = vpop.f32.mrb[0].mxu0
        %v690 = vpop.f32.mrb[0].mxu0
        %691 = vdwg.mxu0
        %v692 = vpack.c.bf16 %v687, %v687
        %vm693 = vcmask 27648
        %694 = vst.msk [vmem:[#allocation2] sm:$0xf] %vm693, %v692
        %695 = vrot.lane.b32.xlu0 %v579, 124
        %v696 = vpop.permute.xlu0 %695
        %697 = vrot.lane.b32.xlu0 %v579, 92
        %v698 = vpop.permute.xlu0 %697
        %v700 = vsel %vm583, %v696, 0
        %v703 = vsel %vm583, %v698, 0
        %705 = vmatprep.subr.bf16.mxu0 0
        %706 = vmatpush1.bf16.xpose.msra.mxu0 %v703
        %707 = vmatprep.subr.bf16.mxu0 0
        %708 = vmatpush1.bf16.xpose.msra.mxu0 0
        %709 = vmatprep.subr.bf16.mxu0 0
        %710 = vmatpush1.bf16.xpose.msra.mxu0 0
        %711 = vmatprep.subr.bf16.mxu0 0
        %712 = vmatpush1.bf16.xpose.msra.mxu0 0
        %713 = vmatprep.subr.bf16.mxu0 0
        %714 = vmatpush1.bf16.xpose.msra.mxu0 0
        %715 = vmatprep.subr.bf16.mxu0 0
        %716 = vmatpush1.bf16.xpose.msra.mxu0 0
        %717 = vmatprep.subr.bf16.mxu0 0
        %718 = vmatpush1.bf16.xpose.msra.mxu0 0
        %719 = vmatprep.subr.bf16.mxu0 0
        %720 = vmatpush1.bf16.xpose.msra.mxu0 0
        %721 = vmatprep.subr.bf16.mxu0 0
        %722 = vmatpush1.bf16.xpose.msra.mxu0 0
        %723 = vmatprep.subr.bf16.mxu0 0
        %724 = vmatpush1.bf16.xpose.msra.mxu0 0
        %725 = vmatprep.subr.bf16.mxu0 0
        %726 = vmatpush1.bf16.xpose.msra.mxu0 0
        %727 = vmatprep.subr.bf16.mxu0 0
        %728 = vmatpush1.bf16.xpose.msra.mxu0 0
        %729 = vmatprep.subr.bf16.mxu0 0
        %730 = vmatpush1.bf16.xpose.msra.mxu0 0
        %731 = vmatprep.subr.bf16.mxu0 0
        %732 = vmatpush1.bf16.xpose.msra.mxu0 0
        %733 = vmatprep.subr.bf16.mxu0 0
        %734 = vmatpush1.bf16.xpose.msra.mxu0 0
        %735 = vmatprep.subr.bf16.mxu0 0
        %736 = vmatpush1.bf16.xpose.msra.mxu0 0
        %737 = vmatprep.mubr.bf16.mxu0 0
        %738 = vmatmul.mubr.bf16.gmra.mrb[0].mxu0 %v700
        %v739 = vpop.f32.mrb[0].mxu0
        %v740 = vadd.f32 0.0, %v739
        %v741 = vpop.f32.mrb[0].mxu0
        %v742 = vpop.f32.mrb[0].mxu0
        %v743 = vpop.f32.mrb[0].mxu0
        %744 = vdwg.mxu0
        %v745 = vsel %vm630, %v740, -inf
        %746 = vmax.xlane.f32.xlu0 %v745
        %v747 = vpop.xlane.xlu0 %746
        %v748 = vsub.f32 %v740, %v747
        %v749 = vmul.f32 %v748, 1.442695
        %v750 = vpow.pop %v749
        %v751 = vsel %vm630, %v750, 0.0
        %752 = vadd.xlane.f32.xlu0 %v751
        %v753 = vpop.xlane.xlu0 %752
        %v754 = vrcp.pop %v753
        %v755 = vmul.f32 %v750, %v754
        %v756 = vpack.c.bf16 %v755, %v755
        %757 = vrot.lane.b32.xlu0 %v579, 60
        %v758 = vpop.permute.xlu0 %757
        %v760 = vsel %vm630, %v756, 0
        %v763 = vsel %vm648, %v758, 0
        %765 = vmatprep.subr.bf16.mxu0 0
        %766 = vmatpush1.bf16.msra.mxu0 %v763
        %767 = vmatprep.subr.bf16.mxu0 0
        %768 = vmatpush1.bf16.msra.mxu0 0
        %769 = vmatprep.subr.bf16.mxu0 0
        %770 = vmatpush1.bf16.msra.mxu0 0
        %771 = vmatprep.subr.bf16.mxu0 0
        %772 = vmatpush1.bf16.msra.mxu0 0
        %773 = vmatprep.subr.bf16.mxu0 0
        %774 = vmatpush1.bf16.msra.mxu0 0
        %775 = vmatprep.subr.bf16.mxu0 0
        %776 = vmatpush1.bf16.msra.mxu0 0
        %777 = vmatprep.subr.bf16.mxu0 0
        %778 = vmatpush1.bf16.msra.mxu0 0
        %779 = vmatprep.subr.bf16.mxu0 0
        %780 = vmatpush1.bf16.msra.mxu0 0
        %781 = vmatprep.subr.bf16.mxu0 0
        %782 = vmatpush1.bf16.msra.mxu0 0
        %783 = vmatprep.subr.bf16.mxu0 0
        %784 = vmatpush1.bf16.msra.mxu0 0
        %785 = vmatprep.subr.bf16.mxu0 0
        %786 = vmatpush1.bf16.msra.mxu0 0
        %787 = vmatprep.subr.bf16.mxu0 0
        %788 = vmatpush1.bf16.msra.mxu0 0
        %789 = vmatprep.subr.bf16.mxu0 0
        %790 = vmatpush1.bf16.msra.mxu0 0
        %791 = vmatprep.subr.bf16.mxu0 0
        %792 = vmatpush1.bf16.msra.mxu0 0
        %793 = vmatprep.subr.bf16.mxu0 0
        %794 = vmatpush1.bf16.msra.mxu0 0
        %795 = vmatprep.subr.bf16.mxu0 0
        %796 = vmatpush1.bf16.msra.mxu0 0
        %797 = vmatprep.mubr.bf16.mxu0 0
        %798 = vmatmul.mubr.bf16.gmra.mrb[0].mxu0 %v760
        %v799 = vpop.f32.mrb[0].mxu0
        %v800 = vadd.f32 0.0, %v799
        %v801 = vpop.f32.mrb[0].mxu0
        %v802 = vpop.f32.mrb[0].mxu0
        %v803 = vpop.f32.mrb[0].mxu0
        %804 = vdwg.mxu0
        %v805 = vpack.c.bf16 %v800, %v800
        %v807 = vunpack.c.l.b16 %v805
        %v808 = vpack.c.b16 %v807, %v807
        %809 = vrot.lane.b32.xlu0 %v808, 4
        %v810 = vpop.permute.xlu0 %809
        %vm812 = vcmask 60448
        %813 = vst.msk [vmem:[#allocation2] sm:$0xf] %vm812, %v810
        %814 = vrot.lane.b32.xlu0 %v579, 120
        %v815 = vpop.permute.xlu0 %814
        %816 = vrot.lane.b32.xlu0 %v579, 88
        %v817 = vpop.permute.xlu0 %816
        %v819 = vsel %vm583, %v815, 0
        %v822 = vsel %vm583, %v817, 0
        %824 = vmatprep.subr.bf16.mxu0 0
        %825 = vmatpush1.bf16.xpose.msra.mxu0 %v822
        %826 = vmatprep.subr.bf16.mxu0 0
        %827 = vmatpush1.bf16.xpose.msra.mxu0 0
        %828 = vmatprep.subr.bf16.mxu0 0
        %829 = vmatpush1.bf16.xpose.msra.mxu0 0
        %830 = vmatprep.subr.bf16.mxu0 0
        %831 = vmatpush1.bf16.xpose.msra.mxu0 0
        %832 = vmatprep.subr.bf16.mxu0 0
        %833 = vmatpush1.bf16.xpose.msra.mxu0 0
        %834 = vmatprep.subr.bf16.mxu0 0
        %835 = vmatpush1.bf16.xpose.msra.mxu0 0
        %836 = vmatprep.subr.bf16.mxu0 0
        %837 = vmatpush1.bf16.xpose.msra.mxu0 0
        %838 = vmatprep.subr.bf16.mxu0 0
        %839 = vmatpush1.bf16.xpose.msra.mxu0 0
        %840 = vmatprep.subr.bf16.mxu0 0
        %841 = vmatpush1.bf16.xpose.msra.mxu0 0
        %842 = vmatprep.subr.bf16.mxu0 0
        %843 = vmatpush1.bf16.xpose.msra.mxu0 0
        %844 = vmatprep.subr.bf16.mxu0 0
        %845 = vmatpush1.bf16.xpose.msra.mxu0 0
        %846 = vmatprep.subr.bf16.mxu0 0
        %847 = vmatpush1.bf16.xpose.msra.mxu0 0
        %848 = vmatprep.subr.bf16.mxu0 0
        %849 = vmatpush1.bf16.xpose.msra.mxu0 0
        %850 = vmatprep.subr.bf16.mxu0 0
        %851 = vmatpush1.bf16.xpose.msra.mxu0 0
        %852 = vmatprep.subr.bf16.mxu0 0
        %853 = vmatpush1.bf16.xpose.msra.mxu0 0
        %854 = vmatprep.subr.bf16.mxu0 0
        %855 = vmatpush1.bf16.xpose.msra.mxu0 0
        %856 = vmatprep.mubr.bf16.mxu0 0
        %857 = vmatmul.mubr.bf16.gmra.mrb[0].mxu0 %v819
        %v858 = vpop.f32.mrb[0].mxu0
        %v859 = vadd.f32 0.0, %v858
        %v860 = vpop.f32.mrb[0].mxu0
        %v861 = vpop.f32.mrb[0].mxu0
        %v862 = vpop.f32.mrb[0].mxu0
        %863 = vdwg.mxu0
        %v864 = vsel %vm630, %v859, -inf
        %865 = vmax.xlane.f32.xlu0 %v864
        %v866 = vpop.xlane.xlu0 %865
        %v867 = vsub.f32 %v859, %v866
        %v868 = vmul.f32 %v867, 1.442695
        %v869 = vpow.pop %v868
        %v870 = vsel %vm630, %v869, 0.0
        %871 = vadd.xlane.f32.xlu0 %v870
        %v872 = vpop.xlane.xlu0 %871
        %v873 = vrcp.pop %v872
        %v874 = vmul.f32 %v869, %v873
        %v875 = vpack.c.bf16 %v874, %v874
        %876 = vrot.lane.b32.xlu0 %v579, 56
        %v877 = vpop.permute.xlu0 %876
        %v879 = vsel %vm630, %v875, 0
        %v882 = vsel %vm648, %v877, 0
        %884 = vmatprep.subr.bf16.mxu0 0
        %885 = vmatpush1.bf16.msra.mxu0 %v882
        %886 = vmatprep.subr.bf16.mxu0 0
        %887 = vmatpush1.bf16.msra.mxu0 0
        %888 = vmatprep.subr.bf16.mxu0 0
        %889 = vmatpush1.bf16.msra.mxu0 0
        %890 = vmatprep.subr.bf16.mxu0 0
        %891 = vmatpush1.bf16.msra.mxu0 0
        %892 = vmatprep.subr.bf16.mxu0 0
        %893 = vmatpush1.bf16.msra.mxu0 0
        %894 = vmatprep.subr.bf16.mxu0 0
        %895 = vmatpush1.bf16.msra.mxu0 0
        %896 = vmatprep.subr.bf16.mxu0 0
        %897 = vmatpush1.bf16.msra.mxu0 0
        %898 = vmatprep.subr.bf16.mxu0 0
        %899 = vmatpush1.bf16.msra.mxu0 0
        %900 = vmatprep.subr.bf16.mxu0 0
        %901 = vmatpush1.bf16.msra.mxu0 0
        %902 = vmatprep.subr.bf16.mxu0 0
        %903 = vmatpush1.bf16.msra.mxu0 0
        %904 = vmatprep.subr.bf16.mxu0 0
        %905 = vmatpush1.bf16.msra.mxu0 0
        %906 = vmatprep.subr.bf16.mxu0 0
        %907 = vmatpush1.bf16.msra.mxu0 0
        %908 = vmatprep.subr.bf16.mxu0 0
        %909 = vmatpush1.bf16.msra.mxu0 0
        %910 = vmatprep.subr.bf16.mxu0 0
        %911 = vmatpush1.bf16.msra.mxu0 0
        %912 = vmatprep.subr.bf16.mxu0 0
        %913 = vmatpush1.bf16.msra.mxu0 0
        %914 = vmatprep.subr.bf16.mxu0 0
        %915 = vmatpush1.bf16.msra.mxu0 0
        %916 = vmatprep.mubr.bf16.mxu0 0
        %917 = vmatmul.mubr.bf16.gmra.mrb[0].mxu0 %v879
        %v918 = vpop.f32.mrb[0].mxu0
        %v919 = vadd.f32 0.0, %v918
        %v920 = vpop.f32.mrb[0].mxu0
        %v921 = vpop.f32.mrb[0].mxu0
        %v922 = vpop.f32.mrb[0].mxu0
        %923 = vdwg.mxu0
        %v924 = vpack.c.bf16 %v919, %v919
        %v926 = vunpack.c.l.b16 %v924
        %v927 = vpack.c.b16 %v926, %v926
        %928 = vrot.lane.b32.xlu0 %v927, 8
        %v929 = vpop.permute.xlu0 %928
        %vm931 = vcmask 93248
        %932 = vst.msk [vmem:[#allocation2] sm:$0xf] %vm931, %v929
        %933 = vrot.lane.b32.xlu0 %v579, 116
        %v934 = vpop.permute.xlu0 %933
        %935 = vrot.lane.b32.xlu0 %v579, 84
        %v936 = vpop.permute.xlu0 %935
        %v938 = vsel %vm583, %v934, 0
        %v941 = vsel %vm583, %v936, 0
        %943 = vmatprep.subr.bf16.mxu0 0
        %944 = vmatpush1.bf16.xpose.msra.mxu0 %v941
        %945 = vmatprep.subr.bf16.mxu0 0
        %946 = vmatpush1.bf16.xpose.msra.mxu0 0
        %947 = vmatprep.subr.bf16.mxu0 0
        %948 = vmatpush1.bf16.xpose.msra.mxu0 0
        %949 = vmatprep.subr.bf16.mxu0 0
        %950 = vmatpush1.bf16.xpose.msra.mxu0 0
        %951 = vmatprep.subr.bf16.mxu0 0
        %952 = vmatpush1.bf16.xpose.msra.mxu0 0
        %953 = vmatprep.subr.bf16.mxu0 0
        %954 = vmatpush1.bf16.xpose.msra.mxu0 0
        %955 = vmatprep.subr.bf16.mxu0 0
        %956 = vmatpush1.bf16.xpose.msra.mxu0 0
        %957 = vmatprep.subr.bf16.mxu0 0
        %958 = vmatpush1.bf16.xpose.msra.mxu0 0
        %959 = vmatprep.subr.bf16.mxu0 0
        %960 = vmatpush1.bf16.xpose.msra.mxu0 0
        %961 = vmatprep.subr.bf16.mxu0 0
        %962 = vmatpush1.bf16.xpose.msra.mxu0 0
        %963 = vmatprep.subr.bf16.mxu0 0
        %964 = vmatpush1.bf16.xpose.msra.mxu0 0
        %965 = vmatprep.subr.bf16.mxu0 0
        %966 = vmatpush1.bf16.xpose.msra.mxu0 0
        %967 = vmatprep.subr.bf16.mxu0 0
        %968 = vmatpush1.bf16.xpose.msra.mxu0 0
        %969 = vmatprep.subr.bf16.mxu0 0
        %970 = vmatpush1.bf16.xpose.msra.mxu0 0
        %971 = vmatprep.subr.bf16.mxu0 0
        %972 = vmatpush1.bf16.xpose.msra.mxu0 0
        %973 = vmatprep.subr.bf16.mxu0 0
        %974 = vmatpush1.bf16.xpose.msra.mxu0 0
        %975 = vmatprep.mubr.bf16.mxu0 0
        %976 = vmatmul.mubr.bf16.gmra.mrb[0].mxu0 %v938
        %v977 = vpop.f32.mrb[0].mxu0
        %v978 = vadd.f32 0.0, %v977
        %v979 = vpop.f32.mrb[0].mxu0
        %v980 = vpop.f32.mrb[0].mxu0
        %v981 = vpop.f32.mrb[0].mxu0
        %982 = vdwg.mxu0
        %v983 = vsel %vm630, %v978, -inf
        %984 = vmax.xlane.f32.xlu0 %v983
        %v985 = vpop.xlane.xlu0 %984
        %v986 = vsub.f32 %v978, %v985
        %v987 = vmul.f32 %v986, 1.442695
        %v988 = vpow.pop %v987
        %v989 = vsel %vm630, %v988, 0.0
        %990 = vadd.xlane.f32.xlu0 %v989
        %v991 = vpop.xlane.xlu0 %990
        %v992 = vrcp.pop %v991
        %v993 = vmul.f32 %v988, %v992
        %v994 = vpack.c.bf16 %v993, %v993
        %995 = vrot.lane.b32.xlu0 %v579, 52
        %v996 = vpop.permute.xlu0 %995
        %v998 = vsel %vm630, %v994, 0
        %v1001 = vsel %vm648, %v996, 0
        %1003 = vmatprep.subr.bf16.mxu0 0
        %1004 = vmatpush1.bf16.msra.mxu0 %v1001
        %1005 = vmatprep.subr.bf16.mxu0 0
        %1006 = vmatpush1.bf16.msra.mxu0 0
        %1007 = vmatprep.subr.bf16.mxu0 0
        %1008 = vmatpush1.bf16.msra.mxu0 0
        %1009 = vmatprep.subr.bf16.mxu0 0
        %1010 = vmatpush1.bf16.msra.mxu0 0
        %1011 = vmatprep.subr.bf16.mxu0 0
        %1012 = vmatpush1.bf16.msra.mxu0 0
        %1013 = vmatprep.subr.bf16.mxu0 0
        %1014 = vmatpush1.bf16.msra.mxu0 0
        %1015 = vmatprep.subr.bf16.mxu0 0
        %1016 = vmatpush1.bf16.msra.mxu0 0
        %1017 = vmatprep.subr.bf16.mxu0 0
        %1018 = vmatpush1.bf16.msra.mxu0 0
        %1019 = vmatprep.subr.bf16.mxu0 0
        %1020 = vmatpush1.bf16.msra.mxu0 0
        %1021 = vmatprep.subr.bf16.mxu0 0
        %1022 = vmatpush1.bf16.msra.mxu0 0
        %1023 = vmatprep.subr.bf16.mxu0 0
        %1024 = vmatpush1.bf16.msra.mxu0 0
        %1025 = vmatprep.subr.bf16.mxu0 0
        %1026 = vmatpush1.bf16.msra.mxu0 0
        %1027 = vmatprep.subr.bf16.mxu0 0
        %1028 = vmatpush1.bf16.msra.mxu0 0
        %1029 = vmatprep.subr.bf16.mxu0 0
        %1030 = vmatpush1.bf16.msra.mxu0 0
        %1031 = vmatprep.subr.bf16.mxu0 0
        %1032 = vmatpush1.bf16.msra.mxu0 0
        %1033 = vmatprep.subr.bf16.mxu0 0
        %1034 = vmatpush1.bf16.msra.mxu0 0
        %1035 = vmatprep.mubr.bf16.mxu0 0
        %1036 = vmatmul.mubr.bf16.gmra.mrb[0].mxu0 %v998
        %v1037 = vpop.f32.mrb[0].mxu0
        %v1038 = vadd.f32 0.0, %v1037
        %v1039 = vpop.f32.mrb[0].mxu0
        %v1040 = vpop.f32.mrb[0].mxu0
        %v1041 = vpop.f32.mrb[0].mxu0
        %1042 = vdwg.mxu0
        %v1043 = vpack.c.bf16 %v1038, %v1038
        %v1045 = vunpack.c.l.b16 %v1043
        %v1046 = vpack.c.b16 %v1045, %v1045
        %1047 = vrot.lane.b32.xlu0 %v1046, 12
        %v1048 = vpop.permute.xlu0 %1047
        %vm1050 = vcmask 126048
        %1051 = vst.msk [vmem:[#allocation2] sm:$0xf] %vm1050, %v1048
        %1052 = vrot.lane.b32.xlu0 %v579, 112
        %v1053 = vpop.permute.xlu0 %1052
        %1054 = vrot.lane.b32.xlu0 %v579, 80
        %v1055 = vpop.permute.xlu0 %1054
        %v1057 = vsel %vm583, %v1053, 0
        %v1060 = vsel %vm583, %v1055, 0
        %1062 = vmatprep.subr.bf16.mxu0 0
        %1063 = vmatpush1.bf16.xpose.msra.mxu0 %v1060
        %1064 = vmatprep.subr.bf16.mxu0 0
        %1065 = vmatpush1.bf16.xpose.msra.mxu0 0
        %1066 = vmatprep.subr.bf16.mxu0 0
        %1067 = vmatpush1.bf16.xpose.msra.mxu0 0
        %1068 = vmatprep.subr.bf16.mxu0 0
        %1069 = vmatpush1.bf16.xpose.msra.mxu0 0
        %1070 = vmatprep.subr.bf16.mxu0 0
        %1071 = vmatpush1.bf16.xpose.msra.mxu0 0
        %1072 = vmatprep.subr.bf16.mxu0 0
        %1073 = vmatpush1.bf16.xpose.msra.mxu0 0
        %1074 = vmatprep.subr.bf16.mxu0 0
        %1075 = vmatpush1.bf16.xpose.msra.mxu0 0
        %1076 = vmatprep.subr.bf16.mxu0 0
        %1077 = vmatpush1.bf16.xpose.msra.mxu0 0
        %1078 = vmatprep.subr.bf16.mxu0 0
        %1079 = vmatpush1.bf16.xpose.msra.mxu0 0
        %1080 = vmatprep.subr.bf16.mxu0 0
        %1081 = vmatpush1.bf16.xpose.msra.mxu0 0
        %1082 = vmatprep.subr.bf16.mxu0 0
        %1083 = vmatpush1.bf16.xpose.msra.mxu0 0
        %1084 = vmatprep.subr.bf16.mxu0 0
        %1085 = vmatpush1.bf16.xpose.msra.mxu0 0
        %1086 = vmatprep.subr.bf16.mxu0 0
        %1087 = vmatpush1.bf16.xpose.msra.mxu0 0
        %1088 = vmatprep.subr.bf16.mxu0 0
        %1089 = vmatpush1.bf16.xpose.msra.mxu0 0
        %1090 = vmatprep.subr.bf16.mxu0 0
        %1091 = vmatpush1.bf16.xpose.msra.mxu0 0
        %1092 = vmatprep.subr.bf16.mxu0 0
        %1093 = vmatpush1.bf16.xpose.msra.mxu0 0
        %1094 = vmatprep.mubr.bf16.mxu0 0
        %1095 = vmatmul.mubr.bf16.gmra.mrb[0].mxu0 %v1057
        %v1096 = vpop.f32.mrb[0].mxu0
        %v1097 = vadd.f32 0.0, %v1096
        %v1098 = vpop.f32.mrb[0].mxu0
        %v1099 = vpop.f32.mrb[0].mxu0
        %v1100 = vpop.f32.mrb[0].mxu0
        %1101 = vdwg.mxu0
        %v1102 = vsel %vm630, %v1097, -inf
        %1103 = vmax.xlane.f32.xlu0 %v1102
        %v1104 = vpop.xlane.xlu0 %1103
        %v1105 = vsub.f32 %v1097, %v1104
        %v1106 = vmul.f32 %v1105, 1.442695
        %v1107 = vpow.pop %v1106
        %v1108 = vsel %vm630, %v1107, 0.0
        %1109 = vadd.xlane.f32.xlu0 %v1108
        %v1110 = vpop.xlane.xlu0 %1109
        %v1111 = vrcp.pop %v1110
        %v1112 = vmul.f32 %v1107, %v1111
        %v1113 = vpack.c.bf16 %v1112, %v1112
        %1114 = vrot.lane.b32.xlu0 %v579, 48
        %v1115 = vpop.permute.xlu0 %1114
        %v1117 = vsel %vm630, %v1113, 0
        %v1120 = vsel %vm648, %v1115, 0
        %1122 = vmatprep.subr.bf16.mxu0 0
        %1123 = vmatpush1.bf16.msra.mxu0 %v1120
        %1124 = vmatprep.subr.bf16.mxu0 0
        %1125 = vmatpush1.bf16.msra.mxu0 0
        %1126 = vmatprep.subr.bf16.mxu0 0
        %1127 = vmatpush1.bf16.msra.mxu0 0
        %1128 = vmatprep.subr.bf16.mxu0 0
        %1129 = vmatpush1.bf16.msra.mxu0 0
        %1130 = vmatprep.subr.bf16.mxu0 0
        %1131 = vmatpush1.bf16.msra.mxu0 0
        %1132 = vmatprep.subr.bf16.mxu0 0
        %1133 = vmatpush1.bf16.msra.mxu0 0
        %1134 = vmatprep.subr.bf16.mxu0 0
        %1135 = vmatpush1.bf16.msra.mxu0 0
        %1136 = vmatprep.subr.bf16.mxu0 0
        %1137 = vmatpush1.bf16.msra.mxu0 0
        %1138 = vmatprep.subr.bf16.mxu0 0
        %1139 = vmatpush1.bf16.msra.mxu0 0
        %1140 = vmatprep.subr.bf16.mxu0 0
        %1141 = vmatpush1.bf16.msra.mxu0 0
        %1142 = vmatprep.subr.bf16.mxu0 0
        %1143 = vmatpush1.bf16.msra.mxu0 0
        %1144 = vmatprep.subr.bf16.mxu0 0
        %1145 = vmatpush1.bf16.msra.mxu0 0
        %1146 = vmatprep.subr.bf16.mxu0 0
        %1147 = vmatpush1.bf16.msra.mxu0 0
        %1148 = vmatprep.subr.bf16.mxu0 0
        %1149 = vmatpush1.bf16.msra.mxu0 0
        %1150 = vmatprep.subr.bf16.mxu0 0
        %1151 = vmatpush1.bf16.msra.mxu0 0
        %1152 = vmatprep.subr.bf16.mxu0 0
        %1153 = vmatpush1.bf16.msra.mxu0 0
        %1154 = vmatprep.mubr.bf16.mxu0 0
        %1155 = vmatmul.mubr.bf16.gmra.mrb[0].mxu0 %v1117
        %v1156 = vpop.f32.mrb[0].mxu0
        %v1157 = vadd.f32 0.0, %v1156
        %v1158 = vpop.f32.mrb[0].mxu0
        %v1159 = vpop.f32.mrb[0].mxu0
        %v1160 = vpop.f32.mrb[0].mxu0
        %1161 = vdwg.mxu0
        %v1162 = vpack.c.bf16 %v1157, %v1157
        %v1164 = vunpack.c.l.b16 %v1162
        %v1165 = vpack.c.b16 %v1164, %v1164
        %1166 = vrot.lane.b32.xlu0 %v1165, 16
        %v1167 = vpop.permute.xlu0 %1166
        %vm1169 = vcmask 158848
        %1170 = vst.msk [vmem:[#allocation2] sm:$0xf] %vm1169, %v1167
        %1171 = vrot.lane.b32.xlu0 %v579, 108
        %v1172 = vpop.permute.xlu0 %1171
        %1173 = vrot.lane.b32.xlu0 %v579, 76
        %v1174 = vpop.permute.xlu0 %1173
        %v1176 = vsel %vm583, %v1172, 0
        %v1179 = vsel %vm583, %v1174, 0
        %1181 = vmatprep.subr.bf16.mxu0 0
        %1182 = vmatpush1.bf16.xpose.msra.mxu0 %v1179
        %1183 = vmatprep.subr.bf16.mxu0 0
        %1184 = vmatpush1.bf16.xpose.msra.mxu0 0
        %1185 = vmatprep.subr.bf16.mxu0 0
        %1186 = vmatpush1.bf16.xpose.msra.mxu0 0
        %1187 = vmatprep.subr.bf16.mxu0 0
        %1188 = vmatpush1.bf16.xpose.msra.mxu0 0
        %1189 = vmatprep.subr.bf16.mxu0 0
        %1190 = vmatpush1.bf16.xpose.msra.mxu0 0
        %1191 = vmatprep.subr.bf16.mxu0 0
        %1192 = vmatpush1.bf16.xpose.msra.mxu0 0
        %1193 = vmatprep.subr.bf16.mxu0 0
        %1194 = vmatpush1.bf16.xpose.msra.mxu0 0
        %1195 = vmatprep.subr.bf16.mxu0 0
        %1196 = vmatpush1.bf16.xpose.msra.mxu0 0
        %1197 = vmatprep.subr.bf16.mxu0 0
        %1198 = vmatpush1.bf16.xpose.msra.mxu0 0
        %1199 = vmatprep.subr.bf16.mxu0 0
        %1200 = vmatpush1.bf16.xpose.msra.mxu0 0
        %1201 = vmatprep.subr.bf16.mxu0 0
        %1202 = vmatpush1.bf16.xpose.msra.mxu0 0
        %1203 = vmatprep.subr.bf16.mxu0 0
        %1204 = vmatpush1.bf16.xpose.msra.mxu0 0
        %1205 = vmatprep.subr.bf16.mxu0 0
        %1206 = vmatpush1.bf16.xpose.msra.mxu0 0
        %1207 = vmatprep.subr.bf16.mxu0 0
        %1208 = vmatpush1.bf16.xpose.msra.mxu0 0
        %1209 = vmatprep.subr.bf16.mxu0 0
        %1210 = vmatpush1.bf16.xpose.msra.mxu0 0
        %1211 = vmatprep.subr.bf16.mxu0 0
        %1212 = vmatpush1.bf16.xpose.msra.mxu0 0
        %1213 = vmatprep.mubr.bf16.mxu0 0
        %1214 = vmatmul.mubr.bf16.gmra.mrb[0].mxu0 %v1176
        %v1215 = vpop.f32.mrb[0].mxu0
        %v1216 = vadd.f32 0.0, %v1215
        %v1217 = vpop.f32.mrb[0].mxu0
        %v1218 = vpop.f32.mrb[0].mxu0
        %v1219 = vpop.f32.mrb[0].mxu0
        %1220 = vdwg.mxu0
        %v1221 = vsel %vm630, %v1216, -inf
        %1222 = vmax.xlane.f32.xlu0 %v1221
        %v1223 = vpop.xlane.xlu0 %1222
        %v1224 = vsub.f32 %v1216, %v1223
        %v1225 = vmul.f32 %v1224, 1.442695
        %v1226 = vpow.pop %v1225
        %v1227 = vsel %vm630, %v1226, 0.0
        %1228 = vadd.xlane.f32.xlu0 %v1227
        %v1229 = vpop.xlane.xlu0 %1228
        %v1230 = vrcp.pop %v1229
        %v1231 = vmul.f32 %v1226, %v1230
        %v1232 = vpack.c.bf16 %v1231, %v1231
        %1233 = vrot.lane.b32.xlu0 %v579, 44
        %v1234 = vpop.permute.xlu0 %1233
        %v1236 = vsel %vm630, %v1232, 0
        %v1239 = vsel %vm648, %v1234, 0
        %1241 = vmatprep.subr.bf16.mxu0 0
        %1242 = vmatpush1.bf16.msra.mxu0 %v1239
        %1243 = vmatprep.subr.bf16.mxu0 0
        %1244 = vmatpush1.bf16.msra.mxu0 0
        %1245 = vmatprep.subr.bf16.mxu0 0
        %1246 = vmatpush1.bf16.msra.mxu0 0
        %1247 = vmatprep.subr.bf16.mxu0 0
        %1248 = vmatpush1.bf16.msra.mxu0 0
        %1249 = vmatprep.subr.bf16.mxu0 0
        %1250 = vmatpush1.bf16.msra.mxu0 0
        %1251 = vmatprep.subr.bf16.mxu0 0
        %1252 = vmatpush1.bf16.msra.mxu0 0
        %1253 = vmatprep.subr.bf16.mxu0 0
        %1254 = vmatpush1.bf16.msra.mxu0 0
        %1255 = vmatprep.subr.bf16.mxu0 0
        %1256 = vmatpush1.bf16.msra.mxu0 0
        %1257 = vmatprep.subr.bf16.mxu0 0
        %1258 = vmatpush1.bf16.msra.mxu0 0
        %1259 = vmatprep.subr.bf16.mxu0 0
        %1260 = vmatpush1.bf16.msra.mxu0 0
        %1261 = vmatprep.subr.bf16.mxu0 0
        %1262 = vmatpush1.bf16.msra.mxu0 0
        %1263 = vmatprep.subr.bf16.mxu0 0
        %1264 = vmatpush1.bf16.msra.mxu0 0
        %1265 = vmatprep.subr.bf16.mxu0 0
        %1266 = vmatpush1.bf16.msra.mxu0 0
        %1267 = vmatprep.subr.bf16.mxu0 0
        %1268 = vmatpush1.bf16.msra.mxu0 0
        %1269 = vmatprep.subr.bf16.mxu0 0
        %1270 = vmatpush1.bf16.msra.mxu0 0
        %1271 = vmatprep.subr.bf16.mxu0 0
        %1272 = vmatpush1.bf16.msra.mxu0 0
        %1273 = vmatprep.mubr.bf16.mxu0 0
        %1274 = vmatmul.mubr.bf16.gmra.mrb[0].mxu0 %v1236
        %v1275 = vpop.f32.mrb[0].mxu0
        %v1276 = vadd.f32 0.0, %v1275
        %v1277 = vpop.f32.mrb[0].mxu0
        %v1278 = vpop.f32.mrb[0].mxu0
        %v1279 = vpop.f32.mrb[0].mxu0
        %1280 = vdwg.mxu0
        %v1281 = vpack.c.bf16 %v1276, %v1276
        %v1283 = vunpack.c.l.b16 %v1281
        %v1284 = vpack.c.b16 %v1283, %v1283
        %1285 = vrot.lane.b32.xlu0 %v1284, 20
        %v1286 = vpop.permute.xlu0 %1285
        %vm1288 = vcmask 191648
        %1289 = vst.msk [vmem:[#allocation2] sm:$0xf] %vm1288, %v1286
        %1290 = vrot.lane.b32.xlu0 %v579, 104
        %v1291 = vpop.permute.xlu0 %1290
        %1292 = vrot.lane.b32.xlu0 %v579, 72
        %v1293 = vpop.permute.xlu0 %1292
        %v1295 = vsel %vm583, %v1291, 0
        %v1298 = vsel %vm583, %v1293, 0
        %1300 = vmatprep.subr.bf16.mxu0 0
        %1301 = vmatpush1.bf16.xpose.msra.mxu0 %v1298
        %1302 = vmatprep.subr.bf16.mxu0 0
        %1303 = vmatpush1.bf16.xpose.msra.mxu0 0
        %1304 = vmatprep.subr.bf16.mxu0 0
        %1305 = vmatpush1.bf16.xpose.msra.mxu0 0
        %1306 = vmatprep.subr.bf16.mxu0 0
        %1307 = vmatpush1.bf16.xpose.msra.mxu0 0
        %1308 = vmatprep.subr.bf16.mxu0 0
        %1309 = vmatpush1.bf16.xpose.msra.mxu0 0
        %1310 = vmatprep.subr.bf16.mxu0 0
        %1311 = vmatpush1.bf16.xpose.msra.mxu0 0
        %1312 = vmatprep.subr.bf16.mxu0 0
        %1313 = vmatpush1.bf16.xpose.msra.mxu0 0
        %1314 = vmatprep.subr.bf16.mxu0 0
        %1315 = vmatpush1.bf16.xpose.msra.mxu0 0
        %1316 = vmatprep.subr.bf16.mxu0 0
        %1317 = vmatpush1.bf16.xpose.msra.mxu0 0
        %1318 = vmatprep.subr.bf16.mxu0 0
        %1319 = vmatpush1.bf16.xpose.msra.mxu0 0
        %1320 = vmatprep.subr.bf16.mxu0 0
        %1321 = vmatpush1.bf16.xpose.msra.mxu0 0
        %1322 = vmatprep.subr.bf16.mxu0 0
        %1323 = vmatpush1.bf16.xpose.msra.mxu0 0
        %1324 = vmatprep.subr.bf16.mxu0 0
        %1325 = vmatpush1.bf16.xpose.msra.mxu0 0
        %1326 = vmatprep.subr.bf16.mxu0 0
        %1327 = vmatpush1.bf16.xpose.msra.mxu0 0
        %1328 = vmatprep.subr.bf16.mxu0 0
        %1329 = vmatpush1.bf16.xpose.msra.mxu0 0
        %1330 = vmatprep.subr.bf16.mxu0 0
        %1331 = vmatpush1.bf16.xpose.msra.mxu0 0
        %1332 = vmatprep.mubr.bf16.mxu0 0
        %1333 = vmatmul.mubr.bf16.gmra.mrb[0].mxu0 %v1295
        %v1334 = vpop.f32.mrb[0].mxu0
        %v1335 = vadd.f32 0.0, %v1334
        %v1336 = vpop.f32.mrb[0].mxu0
        %v1337 = vpop.f32.mrb[0].mxu0
        %v1338 = vpop.f32.mrb[0].mxu0
        %1339 = vdwg.mxu0
        %v1340 = vsel %vm630, %v1335, -inf
        %1341 = vmax.xlane.f32.xlu0 %v1340
        %v1342 = vpop.xlane.xlu0 %1341
        %v1343 = vsub.f32 %v1335, %v1342
        %v1344 = vmul.f32 %v1343, 1.442695
        %v1345 = vpow.pop %v1344
        %v1346 = vsel %vm630, %v1345, 0.0
        %1347 = vadd.xlane.f32.xlu0 %v1346
        %v1348 = vpop.xlane.xlu0 %1347
        %v1349 = vrcp.pop %v1348
        %v1350 = vmul.f32 %v1345, %v1349
        %v1351 = vpack.c.bf16 %v1350, %v1350
        %1352 = vrot.lane.b32.xlu0 %v579, 40
        %v1353 = vpop.permute.xlu0 %1352
        %v1355 = vsel %vm630, %v1351, 0
        %v1358 = vsel %vm648, %v1353, 0
        %1360 = vmatprep.subr.bf16.mxu0 0
        %1361 = vmatpush1.bf16.msra.mxu0 %v1358
        %1362 = vmatprep.subr.bf16.mxu0 0
        %1363 = vmatpush1.bf16.msra.mxu0 0
        %1364 = vmatprep.subr.bf16.mxu0 0
        %1365 = vmatpush1.bf16.msra.mxu0 0
        %1366 = vmatprep.subr.bf16.mxu0 0
        %1367 = vmatpush1.bf16.msra.mxu0 0
        %1368 = vmatprep.subr.bf16.mxu0 0
        %1369 = vmatpush1.bf16.msra.mxu0 0
        %1370 = vmatprep.subr.bf16.mxu0 0
        %1371 = vmatpush1.bf16.msra.mxu0 0
        %1372 = vmatprep.subr.bf16.mxu0 0
        %1373 = vmatpush1.bf16.msra.mxu0 0
        %1374 = vmatprep.subr.bf16.mxu0 0
        %1375 = vmatpush1.bf16.msra.mxu0 0
        %1376 = vmatprep.subr.bf16.mxu0 0
        %1377 = vmatpush1.bf16.msra.mxu0 0
        %1378 = vmatprep.subr.bf16.mxu0 0
        %1379 = vmatpush1.bf16.msra.mxu0 0
        %1380 = vmatprep.subr.bf16.mxu0 0
        %1381 = vmatpush1.bf16.msra.mxu0 0
        %1382 = vmatprep.subr.bf16.mxu0 0
        %1383 = vmatpush1.bf16.msra.mxu0 0
        %1384 = vmatprep.subr.bf16.mxu0 0
        %1385 = vmatpush1.bf16.msra.mxu0 0
        %1386 = vmatprep.subr.bf16.mxu0 0
        %1387 = vmatpush1.bf16.msra.mxu0 0
        %1388 = vmatprep.subr.bf16.mxu0 0
        %1389 = vmatpush1.bf16.msra.mxu0 0
        %1390 = vmatprep.subr.bf16.mxu0 0
        %1391 = vmatpush1.bf16.msra.mxu0 0
        %1392 = vmatprep.mubr.bf16.mxu0 0
        %1393 = vmatmul.mubr.bf16.gmra.mrb[0].mxu0 %v1355
        %v1394 = vpop.f32.mrb[0].mxu0
        %v1395 = vadd.f32 0.0, %v1394
        %v1396 = vpop.f32.mrb[0].mxu0
        %v1397 = vpop.f32.mrb[0].mxu0
        %v1398 = vpop.f32.mrb[0].mxu0
        %1399 = vdwg.mxu0
        %v1400 = vpack.c.bf16 %v1395, %v1395
        %v1402 = vunpack.c.l.b16 %v1400
        %v1403 = vpack.c.b16 %v1402, %v1402
        %1404 = vrot.lane.b32.xlu0 %v1403, 24
        %v1405 = vpop.permute.xlu0 %1404
        %vm1407 = vcmask 224448
        %1408 = vst.msk [vmem:[#allocation2] sm:$0xf] %vm1407, %v1405
        %1409 = vrot.lane.b32.xlu0 %v579, 100
        %v1410 = vpop.permute.xlu0 %1409
        %1411 = vrot.lane.b32.xlu0 %v579, 68
        %v1412 = vpop.permute.xlu0 %1411
        %v1414 = vsel %vm583, %v1410, 0
        %v1417 = vsel %vm583, %v1412, 0
        %1419 = vmatprep.subr.bf16.mxu0 0
        %1420 = vmatpush1.bf16.xpose.msra.mxu0 %v1417
        %1421 = vmatprep.subr.bf16.mxu0 0
        %1422 = vmatpush1.bf16.xpose.msra.mxu0 0
        %1423 = vmatprep.subr.bf16.mxu0 0
        %1424 = vmatpush1.bf16.xpose.msra.mxu0 0
        %1425 = vmatprep.subr.bf16.mxu0 0
        %1426 = vmatpush1.bf16.xpose.msra.mxu0 0
        %1427 = vmatprep.subr.bf16.mxu0 0
        %1428 = vmatpush1.bf16.xpose.msra.mxu0 0
        %1429 = vmatprep.subr.bf16.mxu0 0
        %1430 = vmatpush1.bf16.xpose.msra.mxu0 0
        %1431 = vmatprep.subr.bf16.mxu0 0
        %1432 = vmatpush1.bf16.xpose.msra.mxu0 0
        %1433 = vmatprep.subr.bf16.mxu0 0
        %1434 = vmatpush1.bf16.xpose.msra.mxu0 0
        %1435 = vmatprep.subr.bf16.mxu0 0
        %1436 = vmatpush1.bf16.xpose.msra.mxu0 0
        %1437 = vmatprep.subr.bf16.mxu0 0
        %1438 = vmatpush1.bf16.xpose.msra.mxu0 0
        %1439 = vmatprep.subr.bf16.mxu0 0
        %1440 = vmatpush1.bf16.xpose.msra.mxu0 0
        %1441 = vmatprep.subr.bf16.mxu0 0
        %1442 = vmatpush1.bf16.xpose.msra.mxu0 0
        %1443 = vmatprep.subr.bf16.mxu0 0
        %1444 = vmatpush1.bf16.xpose.msra.mxu0 0
        %1445 = vmatprep.subr.bf16.mxu0 0
        %1446 = vmatpush1.bf16.xpose.msra.mxu0 0
        %1447 = vmatprep.subr.bf16.mxu0 0
        %1448 = vmatpush1.bf16.xpose.msra.mxu0 0
        %1449 = vmatprep.subr.bf16.mxu0 0
        %1450 = vmatpush1.bf16.xpose.msra.mxu0 0
        %1451 = vmatprep.mubr.bf16.mxu0 0
        %1452 = vmatmul.mubr.bf16.gmra.mrb[0].mxu0 %v1414
        %v1453 = vpop.f32.mrb[0].mxu0
        %v1454 = vadd.f32 0.0, %v1453
        %v1455 = vpop.f32.mrb[0].mxu0
        %v1456 = vpop.f32.mrb[0].mxu0
        %v1457 = vpop.f32.mrb[0].mxu0
        %1458 = vdwg.mxu0
        %v1459 = vsel %vm630, %v1454, -inf
        %1460 = vmax.xlane.f32.xlu0 %v1459
        %v1461 = vpop.xlane.xlu0 %1460
        %v1462 = vsub.f32 %v1454, %v1461
        %v1463 = vmul.f32 %v1462, 1.442695
        %v1464 = vpow.pop %v1463
        %v1465 = vsel %vm630, %v1464, 0.0
        %1466 = vadd.xlane.f32.xlu0 %v1465
        %v1467 = vpop.xlane.xlu0 %1466
        %v1468 = vrcp.pop %v1467
        %v1469 = vmul.f32 %v1464, %v1468
        %v1470 = vpack.c.bf16 %v1469, %v1469
        %1471 = vrot.lane.b32.xlu0 %v579, 36
        %v1472 = vpop.permute.xlu0 %1471
        %v1474 = vsel %vm630, %v1470, 0
        %v1477 = vsel %vm648, %v1472, 0
        %1479 = vmatprep.subr.bf16.mxu0 0
        %1480 = vmatpush1.bf16.msra.mxu0 %v1477
        %1481 = vmatprep.subr.bf16.mxu0 0
        %1482 = vmatpush1.bf16.msra.mxu0 0
        %1483 = vmatprep.subr.bf16.mxu0 0
        %1484 = vmatpush1.bf16.msra.mxu0 0
        %1485 = vmatprep.subr.bf16.mxu0 0
        %1486 = vmatpush1.bf16.msra.mxu0 0
        %1487 = vmatprep.subr.bf16.mxu0 0
        %1488 = vmatpush1.bf16.msra.mxu0 0
        %1489 = vmatprep.subr.bf16.mxu0 0
        %1490 = vmatpush1.bf16.msra.mxu0 0
        %1491 = vmatprep.subr.bf16.mxu0 0
        %1492 = vmatpush1.bf16.msra.mxu0 0
        %1493 = vmatprep.subr.bf16.mxu0 0
        %1494 = vmatpush1.bf16.msra.mxu0 0
        %1495 = vmatprep.subr.bf16.mxu0 0
        %1496 = vmatpush1.bf16.msra.mxu0 0
        %1497 = vmatprep.subr.bf16.mxu0 0
        %1498 = vmatpush1.bf16.msra.mxu0 0
        %1499 = vmatprep.subr.bf16.mxu0 0
        %1500 = vmatpush1.bf16.msra.mxu0 0
        %1501 = vmatprep.subr.bf16.mxu0 0
        %1502 = vmatpush1.bf16.msra.mxu0 0
        %1503 = vmatprep.subr.bf16.mxu0 0
        %1504 = vmatpush1.bf16.msra.mxu0 0
        %1505 = vmatprep.subr.bf16.mxu0 0
        %1506 = vmatpush1.bf16.msra.mxu0 0
        %1507 = vmatprep.subr.bf16.mxu0 0
        %1508 = vmatpush1.bf16.msra.mxu0 0
        %1509 = vmatprep.subr.bf16.mxu0 0
        %1510 = vmatpush1.bf16.msra.mxu0 0
        %1511 = vmatprep.mubr.bf16.mxu0 0
        %1512 = vmatmul.mubr.bf16.gmra.mrb[0].mxu0 %v1474
        %v1513 = vpop.f32.mrb[0].mxu0
        %v1514 = vadd.f32 0.0, %v1513
        %v1515 = vpop.f32.mrb[0].mxu0
        %v1516 = vpop.f32.mrb[0].mxu0
        %v1517 = vpop.f32.mrb[0].mxu0
        %1518 = vdwg.mxu0
        %v1519 = vpack.c.bf16 %v1514, %v1514
        %v1521 = vunpack.c.l.b16 %v1519
        %v1522 = vpack.c.b16 %v1521, %v1521
        %1523 = vrot.lane.b32.xlu0 %v1522, 28
        %v1524 = vpop.permute.xlu0 %1523
        %vm1526 = vcmask 257248
        %1527 = vst.msk [vmem:[#allocation2] sm:$0xf] %vm1526, %v1524
        %v1528 = vld [vmem:[#allocation2] sm:$0xf]
        %v1529 = vld [vmem:[%s425] sm:$0xf]
        %v1530 = vld [vmem:[%s425 + $0x4] sm:$0xf]
        %v1531 = vld [vmem:[%s425 + $0x8] sm:$0xf]
        %v1532 = vld [vmem:[%s425 + $0xc] sm:$0xf]
        %v1533 = vlaneseq
        %v1534 = vshrl.u32 %v1533, 7
        %v1535 = vsub.s32 1, %v1534
        %v1536 = vrot.slane %v514, %v1535
        %v1541 = vunpack.c.l.b16 %v1529
        %v1542 = vunpack.c.l.b16 %v1530
        %v1543 = vunpack.c.l.b16 %v1531
        %v1544 = vunpack.c.l.b16 %v1532
        %v1545 = vpack.c.b16 %v1542, %v1541
        %v1546 = vpack.c.b16 %v1544, %v1543
        %v1550 = vsel %vm535, %v1528, 0
        %1552 = vmatprep.subr.bf16.mxu0 0
        %1553 = vmatpush1.bf16.msra.mxu0 %v1545
        %1554 = vmatprep.subr.bf16.mxu0 0
        %1555 = vmatpush1.bf16.msra.mxu0 %v1546
        %1556 = vmatprep.subr.bf16.mxu0 0
        %1557 = vmatpush1.bf16.msra.mxu0 0
        %1558 = vmatprep.subr.bf16.mxu0 0
        %1559 = vmatpush1.bf16.msra.mxu0 0
        %1560 = vmatprep.subr.bf16.mxu0 0
        %1561 = vmatpush1.bf16.msra.mxu0 0
        %1562 = vmatprep.subr.bf16.mxu0 0
        %1563 = vmatpush1.bf16.msra.mxu0 0
        %1564 = vmatprep.subr.bf16.mxu0 0
        %1565 = vmatpush1.bf16.msra.mxu0 0
        %1566 = vmatprep.subr.bf16.mxu0 0
        %1567 = vmatpush1.bf16.msra.mxu0 0
        %1568 = vmatprep.subr.bf16.mxu0 0
        %1569 = vmatpush1.bf16.msra.mxu0 0
        %1570 = vmatprep.subr.bf16.mxu0 0
        %1571 = vmatpush1.bf16.msra.mxu0 0
        %1572 = vmatprep.subr.bf16.mxu0 0
        %1573 = vmatpush1.bf16.msra.mxu0 0
        %1574 = vmatprep.subr.bf16.mxu0 0
        %1575 = vmatpush1.bf16.msra.mxu0 0
        %1576 = vmatprep.subr.bf16.mxu0 0
        %1577 = vmatpush1.bf16.msra.mxu0 0
        %1578 = vmatprep.subr.bf16.mxu0 0
        %1579 = vmatpush1.bf16.msra.mxu0 0
        %1580 = vmatprep.subr.bf16.mxu0 0
        %1581 = vmatpush1.bf16.msra.mxu0 0
        %1582 = vmatprep.subr.bf16.mxu0 0
        %1583 = vmatpush1.bf16.msra.mxu0 0
        %1584 = vmatprep.mubr.bf16.mxu0 0
        %1585 = vmatmul.mubr.bf16.gmra.mrb[0].mxu0 %v1550
        %v1586 = vpop.f32.mrb[0].mxu0
        %v1587 = vadd.f32 %v1536, %v1586
        %v1588 = vpop.f32.mrb[0].mxu0
        %v1589 = vpop.f32.mrb[0].mxu0
        %v1590 = vpop.f32.mrb[0].mxu0
        %1591 = vdwg.mxu0
        %v1592 = vadd.f32 %v512, %v1587
        %v1593 = vsel %vm535, %v1592, 0.0
        %1594 = vadd.xlane.f32.xlu0 %v1593
        %v1595 = vpop.xlane.xlu0 %1594
        %v1596 = vrcp.pop 32.0
        %v1597 = vmul.f32 %v1595, %v1596
        %v1598 = vsub.f32 %v1592, %v1597
        %v1599 = vmul.f32 %v1598, %v1598
        %v1600 = vsel %vm535, %v1599, 0.0
        %1601 = vadd.xlane.f32.xlu0 %v1600
        %v1602 = vpop.xlane.xlu0 %1601
        %v1603 = vmul.f32 %v1602, %v1596
        %v1604 = vadd.f32 %v1603, 1e-05
        %v1605 = vrsqrt.pop %v1604
        %v1606 = vmul.f32 %v1598, %v1605
        %v1607 = vlaneseq
        %v1608 = vshrl.u32 %v1607, 7
        %v1609 = vsub.s32 4, %v1608
        %v1610 = vrot.slane %v514, %v1609
        %v1611 = vmul.f32 %v1606, %v1610
        %v1612 = vlaneseq
        %v1613 = vshrl.u32 %v1612, 7
        %v1614 = vsub.s32 5, %v1613
        %v1615 = vrot.slane %v514, %v1614
        %v1616 = vadd.f32 %v1611, %v1615
        %v1617 = vpack.c.bf16 %v1616, %v1616
        %v1618 = vld [vmem:[%s434] sm:$0xf]
        %v1619 = vld [vmem:[%s434 + $0x4] sm:$0xf]
        %v1620 = vld [vmem:[%s434 + $0x8] sm:$0xf]
        %v1621 = vld [vmem:[%s434 + $0xc] sm:$0xf]
        %v1622 = vlaneseq
        %v1623 = vshrl.u32 %v1622, 7
        %v1624 = vsub.s32 2, %v1623
        %v1625 = vrot.slane %v514, %v1624
        %v1630 = vunpack.c.l.b16 %v1618
        %v1631 = vunpack.c.l.b16 %v1619
        %v1632 = vunpack.c.l.b16 %v1620
        %v1633 = vunpack.c.l.b16 %v1621
        %v1634 = vpack.c.b16 %v1631, %v1630
        %v1635 = vpack.c.b16 %v1633, %v1632
        %v1639 = vsel %vm535, %v1617, 0
        %1641 = vmatprep.subr.bf16.mxu0 0
        %1642 = vmatpush1.bf16.msra.mxu0 %v1634
        %1643 = vmatprep.subr.bf16.mxu0 0
        %1644 = vmatpush1.bf16.msra.mxu0 %v1635
        %1645 = vmatprep.subr.bf16.mxu0 0
        %1646 = vmatpush1.bf16.msra.mxu0 0
        %1647 = vmatprep.subr.bf16.mxu0 0
        %1648 = vmatpush1.bf16.msra.mxu0 0
        %1649 = vmatprep.subr.bf16.mxu0 0
        %1650 = vmatpush1.bf16.msra.mxu0 0
        %1651 = vmatprep.subr.bf16.mxu0 0
        %1652 = vmatpush1.bf16.msra.mxu0 0
        %1653 = vmatprep.subr.bf16.mxu0 0
        %1654 = vmatpush1.bf16.msra.mxu0 0
        %1655 = vmatprep.subr.bf16.mxu0 0
        %1656 = vmatpush1.bf16.msra.mxu0 0
        %1657 = vmatprep.subr.bf16.mxu0 0
        %1658 = vmatpush1.bf16.msra.mxu0 0
        %1659 = vmatprep.subr.bf16.mxu0 0
        %1660 = vmatpush1.bf16.msra.mxu0 0
        %1661 = vmatprep.subr.bf16.mxu0 0
        %1662 = vmatpush1.bf16.msra.mxu0 0
        %1663 = vmatprep.subr.bf16.mxu0 0
        %1664 = vmatpush1.bf16.msra.mxu0 0
        %1665 = vmatprep.subr.bf16.mxu0 0
        %1666 = vmatpush1.bf16.msra.mxu0 0
        %1667 = vmatprep.subr.bf16.mxu0 0
        %1668 = vmatpush1.bf16.msra.mxu0 0
        %1669 = vmatprep.subr.bf16.mxu0 0
        %1670 = vmatpush1.bf16.msra.mxu0 0
        %1671 = vmatprep.subr.bf16.mxu0 0
        %1672 = vmatpush1.bf16.msra.mxu0 0
        %1673 = vmatprep.mubr.bf16.mxu0 0
        %1674 = vmatmul.mubr.bf16.gmra.mrb[0].mxu0 %v1639
        %v1675 = vpop.f32.mrb[0].mxu0
        %v1676 = vadd.f32 %v1625, %v1675
        %v1677 = vpop.f32.mrb[0].mxu0
        %v1678 = vpop.f32.mrb[0].mxu0
        %v1679 = vpop.f32.mrb[0].mxu0
        %1680 = vdwg.mxu0
        %v1681 = vmul.f32 %v1676, 0.70710677
        %v1682 = vand.u32 2147483647, %v1681
        %v1683 = vmul.f32 %v1682, 0.3275911
        %v1684 = vadd.f32 %v1683, 1.0
        %v1685 = vrcp.pop %v1684
        %v1686 = vmul.f32 %v1685, 1.0614054
        %v1687 = vadd.f32 %v1686, -1.4531521
        %v1688 = vmul.f32 %v1687, %v1685
        %v1689 = vadd.f32 %v1688, 1.4214138
        %v1690 = vmul.f32 %v1689, %v1685
        %v1691 = vadd.f32 %v1690, -0.28449672
        %v1692 = vmul.f32 %v1691, %v1685
        %v1693 = vadd.f32 %v1692, 0.2548296
        %v1694 = vmul.f32 %v1693, %v1685
        %v1695 = vsub.f32 0.0, %v1682
        %v1696 = vmul.f32 %v1695, %v1682
        %v1697 = vmul.f32 %v1696, 1.442695
        %v1698 = vpow.pop %v1697
        %v1699 = vmul.f32 %v1694, %v1698
        %v1700 = vsub.f32 1.0, %v1699
        %vm1701 = vcmp.lt.f32.partialorder %v1681, 0.0
        %v1702 = vsub.f32 0.0, %v1700
        %v1703 = vsel %vm1701, %v1702, %v1700
        %v1704 = vmul.f32 %v1676, 0.5
        %v1705 = vadd.f32 %v1703, 1.0
        %v1706 = vmul.f32 %v1704, %v1705
        %v1707 = vpack.c.bf16 %v1706, %v1706
        %v1708 = vld [vmem:[%s443] sm:$0xf]
        %v1709 = vld [vmem:[%s443 + $0x4] sm:$0xf]
        %v1710 = vld [vmem:[%s443 + $0x8] sm:$0xf]
        %v1711 = vld [vmem:[%s443 + $0xc] sm:$0xf]
        %v1712 = vlaneseq
        %v1713 = vshrl.u32 %v1712, 7
        %v1714 = vsub.s32 3, %v1713
        %v1715 = vrot.slane %v514, %v1714
        %v1720 = vunpack.c.l.b16 %v1708
        %v1721 = vunpack.c.l.b16 %v1709
        %v1722 = vunpack.c.l.b16 %v1710
        %v1723 = vunpack.c.l.b16 %v1711
        %v1724 = vpack.c.b16 %v1721, %v1720
        %v1725 = vpack.c.b16 %v1723, %v1722
        %v1729 = vsel %vm535, %v1707, 0
        %1731 = vmatprep.subr.bf16.mxu0 0
        %1732 = vmatpush1.bf16.msra.mxu0 %v1724
        %1733 = vmatprep.subr.bf16.mxu0 0
        %1734 = vmatpush1.bf16.msra.mxu0 %v1725
        %1735 = vmatprep.subr.bf16.mxu0 0
        %1736 = vmatpush1.bf16.msra.mxu0 0
        %1737 = vmatprep.subr.bf16.mxu0 0
        %1738 = vmatpush1.bf16.msra.mxu0 0
        %1739 = vmatprep.subr.bf16.mxu0 0
        %1740 = vmatpush1.bf16.msra.mxu0 0
        %1741 = vmatprep.subr.bf16.mxu0 0
        %1742 = vmatpush1.bf16.msra.mxu0 0
        %1743 = vmatprep.subr.bf16.mxu0 0
        %1744 = vmatpush1.bf16.msra.mxu0 0
        %1745 = vmatprep.subr.bf16.mxu0 0
        %1746 = vmatpush1.bf16.msra.mxu0 0
        %1747 = vmatprep.subr.bf16.mxu0 0
        %1748 = vmatpush1.bf16.msra.mxu0 0
        %1749 = vmatprep.subr.bf16.mxu0 0
        %1750 = vmatpush1.bf16.msra.mxu0 0
        %1751 = vmatprep.subr.bf16.mxu0 0
        %1752 = vmatpush1.bf16.msra.mxu0 0
        %1753 = vmatprep.subr.bf16.mxu0 0
        %1754 = vmatpush1.bf16.msra.mxu0 0
        %1755 = vmatprep.subr.bf16.mxu0 0
        %1756 = vmatpush1.bf16.msra.mxu0 0
        %1757 = vmatprep.subr.bf16.mxu0 0
        %1758 = vmatpush1.bf16.msra.mxu0 0
        %1759 = vmatprep.subr.bf16.mxu0 0
        %1760 = vmatpush1.bf16.msra.mxu0 0
        %1761 = vmatprep.subr.bf16.mxu0 0
        %1762 = vmatpush1.bf16.msra.mxu0 0
        %1763 = vmatprep.mubr.bf16.mxu0 0
        %1764 = vmatmul.mubr.bf16.gmra.mrb[0].mxu0 %v1729
        %v1765 = vpop.f32.mrb[0].mxu0
        %v1766 = vadd.f32 %v1715, %v1765
        %v1767 = vpop.f32.mrb[0].mxu0
        %v1768 = vpop.f32.mrb[0].mxu0
        %v1769 = vpop.f32.mrb[0].mxu0
        %1770 = vdwg.mxu0
        %v1771 = vadd.f32 %v1616, %v1766
        %v1772 = vsel %vm535, %v1771, 0.0
        %1773 = vadd.xlane.f32.xlu0 %v1772
        %v1774 = vpop.xlane.xlu0 %1773
        %v1775 = vmul.f32 %v1774, %v1596
        %v1776 = vsub.f32 %v1771, %v1775
        %v1777 = vmul.f32 %v1776, %v1776
        %v1778 = vsel %vm535, %v1777, 0.0
        %1779 = vadd.xlane.f32.xlu0 %v1778
        %v1780 = vpop.xlane.xlu0 %1779
        %v1781 = vmul.f32 %v1780, %v1596
        %v1782 = vadd.f32 %v1781, 1e-05
        %v1783 = vrsqrt.pop %v1782
        %v1784 = vmul.f32 %v1776, %v1783
        %v1785 = vlaneseq
        %v1786 = vshrl.u32 %v1785, 7
        %v1787 = vsub.s32 6, %v1786
        %v1788 = vrot.slane %v514, %v1787
        %v1789 = vmul.f32 %v1784, %v1788
        %v1790 = vlaneseq
        %v1791 = vshrl.u32 %v1790, 7
        %v1792 = vsub.s32 7, %v1791
        %v1793 = vrot.slane %v514, %v1792
        %v1794 = vadd.f32 %v1789, %v1793
        %p1795 = scmp.ne.s32.totalorder %s36, 1
        // Predicated region
        $region77: #{tpu_custom_call.1} parent=51 // pred_check
          %p1796 = pneg %p1795
        $region78: #{tpu_custom_call.1} parent=51 // pred_check_branch
          %1798 = sbr.rel (%p1796) target = $region80
        $region79: #{tpu_custom_call.1} parent=51 // pred_region
          %1799 = vst.msk [vmem:[%s499] sm:$0xff] %vm535, %v1794
        $region80: #{tpu_custom_call.1} parent=51 // pred_fallthru
          _
        %p1800 = scmp.eq.s32.totalorder %s36, 1
        // Predicated region
        $region81: #{tpu_custom_call.1} parent=51 // pred_check
          %p1801 = pneg %p1800
        $region82: #{tpu_custom_call.1} parent=51 // pred_check_branch
          %1803 = sbr.rel (%p1801) target = $region84
        $region83: #{tpu_custom_call.1} parent=51 // pred_region
          %v1804 = vld [vmem:[%s6] sm:$0x1]
          %v1805 = vld [vmem:[%s7] sm:$0x1]
          %v1806 = vsel %vm535, %v1794, 0.0
          %1807 = vadd.xlane.f32.xlu0 %v1806
          %v1808 = vpop.xlane.xlu0 %1807
          %v1809 = vmul.f32 %v1808, %v1596
          %v1810 = vsub.f32 %v1794, %v1809
          %v1811 = vmul.f32 %v1810, %v1810
          %v1812 = vsel %vm535, %v1811, 0.0
          %1813 = vadd.xlane.f32.xlu0 %v1812
          %v1814 = vpop.xlane.xlu0 %1813
          %v1815 = vmul.f32 %v1814, %v1596
          %v1816 = vadd.f32 %v1815, 1e-05
          %v1817 = vrsqrt.pop %v1816
          %v1818 = vmul.f32 %v1810, %v1817
          %v1820 = vlaneseq
          %v1821 = vshrl.u32 %v1820, 7
          %v1822 = vsub.s32 0, %v1821
          %v1823 = vrot.slane %v1804, %v1822
          %v1825 = vmul.f32 %v1818, %v1823
          %v1827 = vlaneseq
          %v1828 = vshrl.u32 %v1827, 7
          %v1829 = vsub.s32 0, %v1828
          %v1830 = vrot.slane %v1805, %v1829
          %v1832 = vadd.f32 %v1825, %v1830
          %1833 = vst.msk [vmem:[%s499] sm:$0xff] %vm535, %v1832
        $region84: #{tpu_custom_call.1} parent=51 // pred_fallthru
          _
        %s1834 = sand.u32 %s249, 1
        %s1835 = scalar_lea.sflag [#allocation5], %s1834
        %s1836 = sand.u32 %s249, 1
        %s1837 = smul.addr %s1836, 8
        %s1838 = scalar_lea.vmem [#allocation12], %s1837
        // Predicated region
        $region85: #{tpu_custom_call.1} parent=51 // pred_check
          %p1839 = pneg %p259
        $region86: #{tpu_custom_call.1} parent=51 // pred_check_branch
          %1841 = sbr.rel (%p1839) target = $region88
        $region87: #{tpu_custom_call.1} parent=51 // pred_region
          %s1843 = ssub.s32 128, 128
          %1844 = vsyncadd %s1835, %s1843
          %s1845 = smul.addr %s35, 128
          %s1846 = scalar_lea.hbm %s8, %s1845
          %s1848 = sshll.u32 %s1838, 4
          %s1849 = int_to_ptr.vmem [resolvable:$true] %s1848
          %1851 = dma.vmem_to_hbm [thread:$0]  %s1849, 128, %s1846, %s1835
        $region88: #{tpu_custom_call.1} parent=51 // pred_fallthru
          _
      $region52: #{tpu_custom_call.1} parent=5 // pred_fallthru
        _
      %p1852 = scmp.le.s32.totalorder 2, %s26
      // Predicated region
      $region89: #{tpu_custom_call.1} parent=5 // pred_check
        %p1853 = pneg %p1852
      $region90: #{tpu_custom_call.1} parent=5 // pred_check_branch
        %1855 = sbr.rel (%p1853) target = $region92
      $region91: #{tpu_custom_call.1} parent=5 // pred_region
        %s1856 = ssub.s32 %s26, 2
        // Predicated region
        $region93: #{tpu_custom_call.1} parent=91 // pred_check
          %p1857 = pneg %p265
        $region94: #{tpu_custom_call.1} parent=91 // pred_check_branch
          %1859 = sbr.rel (%p1857) target = $region96
        $region95: #{tpu_custom_call.1} parent=91 // pred_region
          %s1860 = sand.u32 %s250, 1
          %s1861 = scalar_lea.sflag [#allocation5], %s1860
          %s1862 = sand.u32 %s250, 1
          %s1863 = smul.addr %s1862, 8
          %s1864 = scalar_lea.vmem [#allocation12], %s1863
          %1865 = dma.done %s1861, 128
        $region96: #{tpu_custom_call.1} parent=91 // pred_fallthru
          _
      $region92: #{tpu_custom_call.1} parent=5 // pred_fallthru
        _
    $region6: #{tpu_custom_call.1} parent=1 // loop_footer
      %s30 = sadd.s32 1, %s26
    $region7: #{tpu_custom_call.1} parent=1 // loop_footer_branch
      %25 = sbr.rel target = $region3
    $region8: #{tpu_custom_call.1} parent=1 // loop_exit
      _
    %1866 = vsyncpa [#allocation4], 1
    %s1867 = scalar_lea.sflag [#allocation4], 1
    %1868 = vsyncpa %s1867, 1
    %1869 = vsyncpa [#allocation7], 1
    %s1870 = scalar_lea.sflag [#allocation7], 1
    %1871 = vsyncpa %s1870, 1
    %1872 = vsyncpa [#allocation10], 1
    %s1873 = scalar_lea.sflag [#allocation10], 1
    %1874 = vsyncpa %s1873, 1
    %1875 = vsyncpa [#allocation5], 1
    %s1876 = scalar_lea.sflag [#allocation5], 1
    %1877 = vsyncpa %s1876, 1

</llo_original>
